<compile_context>
chip_gen: v6e
topology: v6e:2x2x1
jax: 0.10.0
libtpu: 0.0.40
codegen_flags: <defaults>
</compile_context>

<pallas_src>
import functools

import jax
import jax.numpy as jnp
from jax import lax
from jax.experimental import pallas as pl
from jax.experimental.pallas import tpu as pltpu

K = 3    # KPA kernel_size
G = 2    # KPA num_groups
RR = 4   # KPA reduction_ratio


# ----------------------------------------------------------------------------
# Pallas kernel: fused dynamic (per-plane) depthwise 3x3 conv + bias + residual
#     out = moire + a * (conv3x3(x, w_plane) + bias_plane)
# The mixing scalar `a` of Decoder_KPA is folded into the per-plane
# coefficients wrapper-side (c = [a*w_0 .. a*w_8, a*bias]).
#
# Layout: each (b, c) plane is one sublane row; the flattened H*W spatial axis
# sits on lanes (lane-dense, no padded row stride); the plane axis is tiled by
# the grid.  A conv tap (kh, kw) needs source (h+kh-1, w+kw-1):
#   * column offset kw-1 -> zero-filled +-1 lane shift, masked at row edges,
#   * row    offset kh-1 -> zero-filled +-W lane shift (whole row, no bleed).
# The 3x3 sum is factored so only 4 shifted copies are built instead of 9:
#   t_kh = sum_kw c[kh,kw] * colshift_kw(x)    (3 FMAs each, VPU only)
#   out  = moire + a*bias + t_1 + rowshift(t_0, -1) + rowshift(t_2, +1)
# ----------------------------------------------------------------------------
def _kpa_fused_kernel(H, W, c_ref, x_ref, m_ref, o_ref):
    L = H * W
    x = x_ref[...]                                   # (T, L) plane tile
    c = c_ref[...]                                   # (T, 10) per-plane coeffs
    T = x.shape[0]

    # Column position of every lane (trace-time constant vector).
    w_pos = lax.broadcasted_iota(jnp.int32, (1, L), 1) % W

    zcol = jnp.zeros((T, 1), x.dtype)
    # source column w-1 (zero at w == 0; mask kills cross-row bleed)
    x_m1 = jnp.where(w_pos >= 1,
                     jnp.concatenate([zcol, x[:, :L - 1]], axis=1), 0.0)
    # source column w+1 (zero at w == W-1)
    x_p1 = jnp.where(w_pos <= W - 2,
                     jnp.concatenate([x[:, 1:], zcol], axis=1), 0.0)

    def row_comb(kh):                                # pure VPU FMAs
        return (c[:, 3 * kh + 0:3 * kh + 1] * x_m1
                + c[:, 3 * kh + 1:3 * kh + 2] * x
                + c[:, 3 * kh + 2:3 * kh + 3] * x_p1)

    t_top = row_comb(0)     # taps reading source row h-1
    t_mid = row_comb(1)     # taps reading source row h
    t_bot = row_comb(2)     # taps reading source row h+1

    zrow = jnp.zeros((T, W), x.dtype)
    # out[h] += t_top[h-1]   (zero contribution for h == 0)
    top_sh = jnp.concatenate([zrow, t_top[:, :L - W]], axis=1)
    # out[h] += t_bot[h+1]   (zero contribution for h == H-1)
    bot_sh = jnp.concatenate([t_bot[:, W:], zrow], axis=1)

    out = m_ref[...] + c[:, K * K:K * K + 1] + t_mid + top_sh + bot_sh
    o_ref[...] = out.astype(o_ref.dtype)


def _choose_bc_tile(BC, L):
    """Plane-axis tile: multiple of 8 (BlockSpec rule), >= 2 grid steps when
    the plane count allows it (pipelining + megacore), and a per-step VMEM
    footprint that stays well under v7x's budget (~12 live (tile, L) f32
    slabs incl. double-buffered ins/outs and the shift temporaries)."""
    if BC % 8 != 0:
        return BC                       # full-dim block is exempt from 8-rule
    budget = 16 << 20                   # conservative half of v7x scoped VMEM
    tile = 8
    for cand in (256, 128, 64, 32, 16, 8):
        if (BC % cand == 0 and cand <= max(8, BC // 2)
                and 12 * cand * L * 4 <= budget):
            tile = cand
            break
    return tile


def fused_kpa_combine(coeff, xf, mf, H, W):
    """coeff: (BC, 10) = [a*w taps (row-major 3x3), a*bias];
    xf, mf: (BC, H*W) contiguous plane views.  Returns (BC, H*W) f32."""
    BC, L = xf.shape
    tile = _choose_bc_tile(BC, L)
    grid = (BC // tile,)
    kernel = functools.partial(_kpa_fused_kernel, H, W)
    return pl.pallas_call(
        kernel,
        out_shape=jax.ShapeDtypeStruct((BC, L), jnp.float32),
        grid=grid,
        in_specs=[
            pl.BlockSpec((tile, K * K + 1), lambda i: (i, 0)),   # coeffs
            pl.BlockSpec((tile, L), lambda i: (i, 0)),           # x planes
            pl.BlockSpec((tile, L), lambda i: (i, 0)),           # moire planes
        ],
        out_specs=pl.BlockSpec((tile, L), lambda i: (i, 0)),
        # moire and output share the same HBM buffer when XLA can donate it
        # (inside the full network moire is an intermediate, so no copy).
        input_output_aliases={2: 0},
        compiler_params=pltpu.CompilerParams(
            dimension_semantics=("parallel",)),
        cost_estimate=pl.CostEstimate(
            flops=20 * BC * L,
            transcendentals=0,
            bytes_accessed=4 * (3 * BC * L + BC * (K * K + 1))),
    )(coeff, xf, mf)


# ----------------------------------------------------------------------------
# Plain-JAX glue reproducing KPA's tiny pre-compute (pool / proj / softmax)
# ----------------------------------------------------------------------------
def adaptive_avg_pool2d(x, k):
    """Matches torch.nn.AdaptiveAvgPool2d((k, k)) exactly."""
    _, _, Hd, Wd = x.shape
    rows = []
    for i in range(k):
        hs, he = (i * Hd) // k, -((-(i + 1) * Hd) // k)
        cols = []
        for j in range(k):
            ws, we = (j * Wd) // k, -((-(j + 1) * Wd) // k)
            cols.append(jnp.mean(x[:, :, hs:he, ws:we], axis=(2, 3)))
        rows.append(jnp.stack(cols, axis=-1))
    return jnp.stack(rows, axis=-2)                # (B, C, k, k)


def proj_apply(feat, p):
    """1x1 conv -> GELU -> 1x1 conv (ConvModule + Conv2d in KPA.proj)."""
    h = jnp.einsum('oi,bikl->bokl', p['W1'], feat) + p['b1'][None, :, None, None]
    h = jax.nn.gelu(h, approximate=False)          # nn.GELU() is exact erf
    return jnp.einsum('oi,bikl->bokl', p['W2'], h) + p['b2'][None, :, None, None]


def fusion_level(y_m, y_w, p, a, use_pallas=True):
    """Decoder level: returns y_m + a * KPA(y_w, y_m)."""
    B, C, H, W = y_w.shape
    BC = B * C
    xx = adaptive_avg_pool2d(y_w, K)
    mm = adaptive_avg_pool2d(y_m, K)
    feat = jnp.concatenate([mm, xx], axis=1)                       # (B, 2C, 3, 3)

    scale = proj_apply(feat, p).reshape(B, G, C, K, K)
    scale = jax.nn.softmax(scale, axis=1)
    w = jnp.sum(scale * p['weight'][None], axis=1)                 # (B, C, 3, 3)

    feat_mean = jnp.mean(feat, axis=(2, 3), keepdims=True)         # (B, 2C, 1, 1)
    sb = jax.nn.softmax(proj_apply(feat_mean, p).reshape(B, G, C), axis=1)
    bias = jnp.sum(sb * p['bias'][None], axis=1)                   # (B, C)

    a_f = jnp.asarray(a, jnp.float32)

    if use_pallas:
        # Fold the mixing scalar `a` into weights/bias (w'=a*w, b'=a*bias).
        coeff = jnp.concatenate(
            [(a_f * w).reshape(BC, K * K), (a_f * bias).reshape(BC, 1)],
            axis=1).astype(jnp.float32)                            # (BC, 10)
        out = fused_kpa_combine(coeff,
                                y_w.reshape(BC, H * W),
                                y_m.reshape(BC, H * W), H, W)
        return out.reshape(B, C, H, W)
    else:
        # pure-JAX reference of the depthwise dynamic conv (for validation)
        y = lax.conv_general_dilated(
            y_w.reshape(1, BC, H, W), w.reshape(BC, 1, K, K),
            window_strides=(1, 1), padding='SAME',
            dimension_numbers=('NCHW', 'OIHW', 'NCHW'),
            feature_group_count=BC, precision=lax.Precision.HIGHEST)
        kpa = y.reshape(B, C, H, W) + bias.reshape(B, C, 1, 1)
        return y_m + a_f * kpa


def decoder_forward(params, y_m_1, y_m_2, y_m_3, y_w_1, y_w_2, y_w_3,
                    use_pallas=True):
    x_3 = fusion_level(y_m_3, y_w_3, params['kpa3'], params['a_3'], use_pallas)
    x_2 = fusion_level(y_m_2, y_w_2, params['kpa2'], params['a_2'], use_pallas)
    x_1 = fusion_level(y_m_1, y_w_1, params['kpa1'], params['a_1'], use_pallas)
    return x_1, x_2, x_3


decoder_pallas = jax.jit(functools.partial(decoder_forward, use_pallas=True))
decoder_ref = jax.jit(functools.partial(decoder_forward, use_pallas=False))


# ----------------------------------------------------------------------------
# Deterministic parameter init (synthetic; mirrors the module's shapes)
# ----------------------------------------------------------------------------
def init_kpa_params(key, dim):
    hid = dim // RR
    ks = jax.random.split(key, 4)
    return {
        # nn.Parameter(torch.empty(G, dim, K, K)) -> deterministic random fill
        'weight': 0.1 * jax.random.normal(ks[0], (G, dim, K, K), jnp.float32),
        # trunc_normal_(std=0.02) approximated by normal * 0.02
        'bias': 0.02 * jax.random.normal(ks[1], (G, dim), jnp.float32),
        # proj: Conv2d(2*dim -> dim//4, 1x1) + GELU, then Conv2d(dim//4 -> G*dim, 1x1)
        'W1': jax.random.normal(ks[2], (hid, 2 * dim), jnp.float32) / jnp.sqrt(2.0 * dim),
        'b1': jnp.zeros((hid,), jnp.float32),
        'W2': jax.random.normal(ks[3], (G * dim, hid), jnp.float32) / jnp.sqrt(float(hid)),
        'b2': jnp.zeros((G * dim,), jnp.float32),
    }


def init_decoder_params(key, en_num):
    k3, k2, k1 = jax.random.split(key, 3)
    return {
        'kpa3': init_kpa_params(k3, 4 * en_num),
        'kpa2': init_kpa_params(k2, 2 * en_num),
        'kpa1': init_kpa_params(k1, en_num),
        # as in Decoder_KPA.__init__: a_i = 0.0
        'a_3': jnp.array(0.0, jnp.float32),
        'a_2': jnp.array(0.0, jnp.float32),
        'a_1': jnp.array(0.0, jnp.float32),
    }


if __name__ == "__main__":
    en_num = 8
    B = 2
    key = jax.random.PRNGKey(0)
    pk, dk = jax.random.split(key)
    params = init_decoder_params(pk, en_num)

    ks = jax.random.split(dk, 6)
    y_m_1 = jax.random.normal(ks[0], (B, en_num, 16, 16), jnp.float32)
    y_m_2 = jax.random.normal(ks[1], (B, 2 * en_num, 8, 8), jnp.float32)
    y_m_3 = jax.random.normal(ks[2], (B, 4 * en_num, 4, 4), jnp.float32)
    y_w_1 = jax.random.normal(ks[3], (B, en_num, 16, 16), jnp.float32)
    y_w_2 = jax.random.normal(ks[4], (B, 2 * en_num, 8, 8), jnp.float32)
    y_w_3 = jax.random.normal(ks[5], (B, 4 * en_num, 4, 4), jnp.float32)
    inputs = (y_m_1, y_m_2, y_m_3, y_w_1, y_w_2, y_w_3)

    # Faithful run (a_i = 0.0 as in __init__)
    outs0 = jax.block_until_ready(decoder_pallas(params, *inputs))

    # Exercise the dynamic-conv path with nonzero mixing scalars and validate
    # the Pallas kernel against a pure-JAX reference.
    params_nz = dict(params)
    params_nz['a_1'] = jnp.array(0.3, jnp.float32)
    params_nz['a_2'] = jnp.array(-0.7, jnp.float32)
    params_nz['a_3'] = jnp.array(1.1, jnp.float32)
    outs_p = jax.block_until_ready(decoder_pallas(params_nz, *inputs))
    outs_r = jax.block_until_ready(decoder_ref(params_nz, *inputs))
    for o_p, o_r in zip(outs_p, outs_r):
        err = float(jnp.max(jnp.abs(o_p - o_r)))
        assert err < 2e-4, f"mismatch vs reference: {err}"

    print("KERNEL_OK")
</pallas_src>

<mosaic_0001>
module attributes {stable_mosaic.version = 11 : i64} {
  func.func @_kpa_fused_kernel(%arg0: i32, %arg1: memref<32x10xf32, #tpu.memory_space<vmem>>, %arg2: memref<32x16xf32, #tpu.memory_space<vmem>>, %arg3: memref<32x16xf32, #tpu.memory_space<vmem>>, %arg4: memref<32x16xf32, #tpu.memory_space<vmem>>) attributes {dimension_semantics = [#tpu.dimension_semantics<parallel>], iteration_bounds = array<i64: 2>, scalar_prefetch = 0 : i64, scratch_operands = 0 : i64, tpu.core_type = #tpu.core_type<tc>, window_params = [{transform_indices = @transform_0, window_bounds = array<i64: 32, 10>}, {transform_indices = @transform_1, window_bounds = array<i64: 32, 16>}, {transform_indices = @transform_2, window_bounds = array<i64: 32, 16>}, {transform_indices = @transform_3, window_bounds = array<i64: 32, 16>}]} {
    %c0 = arith.constant 0 : index
    %c0_0 = arith.constant 0 : index
    %0 = vector.load %arg2[%c0, %c0_0] : memref<32x16xf32, #tpu.memory_space<vmem>>, vector<32x16xf32>
    %c0_1 = arith.constant 0 : index
    %c0_2 = arith.constant 0 : index
    %1 = vector.load %arg1[%c0_1, %c0_2] : memref<32x10xf32, #tpu.memory_space<vmem>>, vector<32x10xf32>
    %2 = tpu.iota {dimensions = array<i32: 1>} : vector<1x16xi32>
    %c4_i32 = arith.constant 4 : i32
    %c0_i32 = arith.constant 0 : i32
    %3 = arith.cmpi eq, %c4_i32, %c0_i32 : i32
    %c1_i32 = arith.constant 1 : i32
    %4 = arith.select %3, %c1_i32, %c4_i32 : i32
    %5 = vector.broadcast %4 : i32 to vector<1x16xi32>
    %6 = arith.remsi %2, %5 : vector<1x16xi32>
    %c0_i32_3 = arith.constant 0 : i32
    %7 = vector.broadcast %c0_i32_3 : i32 to vector<1x16xi32>
    %8 = arith.cmpi ne, %6, %7 : vector<1x16xi32>
    %c0_i32_4 = arith.constant 0 : i32
    %9 = vector.broadcast %c0_i32_4 : i32 to vector<1x16xi32>
    %10 = arith.cmpi slt, %6, %9 : vector<1x16xi32>
    %c0_i32_5 = arith.constant 0 : i32
    %11 = arith.cmpi slt, %4, %c0_i32_5 : i32
    %12 = vector.broadcast %11 : i1 to vector<1x16xi1>
    %13 = vector.broadcast %12 : vector<1x16xi1> to vector<1x16xi1>
    %14 = arith.xori %10, %13 : vector<1x16xi1>
    %15 = arith.andi %14, %8 : vector<1x16xi1>
    %16 = vector.broadcast %4 : i32 to vector<1x16xi32>
    %17 = arith.addi %6, %16 : vector<1x16xi32>
    %18 = arith.select %15, %17, %6 : vector<1x16xi1>, vector<1x16xi32>
    %cst = arith.constant 0.000000e+00 : f32
    %19 = vector.broadcast %cst : f32 to vector<32x1xf32>
    %c1_i32_6 = arith.constant 1 : i32
    %20 = vector.broadcast %c1_i32_6 : i32 to vector<1x16xi32>
    %21 = arith.cmpi sge, %18, %20 : vector<1x16xi32>
    %22 = vector.extract_strided_slice %0 {offsets = [0, 0], sizes = [32, 15], strides = [1, 1]} : vector<32x16xf32> to vector<32x15xf32>
    %23 = tpu.concatenate %19, %22 in 1 : vector<32x1xf32>, vector<32x15xf32> -> vector<32x16xf32>
    %cst_7 = arith.constant 0.000000e+00 : f32
    %24 = vector.shape_cast %21 : vector<1x16xi1> to vector<1x16xi1>
    %25 = vector.broadcast %24 : vector<1x16xi1> to vector<32x16xi1>
    %26 = vector.broadcast %cst_7 : f32 to vector<32x16xf32>
    %27 = arith.select %25, %23, %26 : vector<32x16xi1>, vector<32x16xf32>
    %c2_i32 = arith.constant 2 : i32
    %28 = vector.broadcast %c2_i32 : i32 to vector<1x16xi32>
    %29 = arith.cmpi sle, %18, %28 : vector<1x16xi32>
    %30 = vector.extract_strided_slice %0 {offsets = [0, 1], sizes = [32, 15], strides = [1, 1]} : vector<32x16xf32> to vector<32x15xf32>
    %31 = tpu.concatenate %30, %19 in 1 : vector<32x15xf32>, vector<32x1xf32> -> vector<32x16xf32>
    %cst_8 = arith.constant 0.000000e+00 : f32
    %32 = vector.shape_cast %29 : vector<1x16xi1> to vector<1x16xi1>
    %33 = vector.broadcast %32 : vector<1x16xi1> to vector<32x16xi1>
    %34 = vector.broadcast %cst_8 : f32 to vector<32x16xf32>
    %35 = arith.select %33, %31, %34 : vector<32x16xi1>, vector<32x16xf32>
    %36 = vector.extract_strided_slice %1 {offsets = [0, 0], sizes = [32, 1], strides = [1, 1]} : vector<32x10xf32> to vector<32x1xf32>
    %37 = vector.broadcast %36 : vector<32x1xf32> to vector<32x16xf32>
    %38 = arith.mulf %37, %27 : vector<32x16xf32>
    %39 = vector.extract_strided_slice %1 {offsets = [0, 1], sizes = [32, 1], strides = [1, 1]} : vector<32x10xf32> to vector<32x1xf32>
    %40 = vector.broadcast %39 : vector<32x1xf32> to vector<32x16xf32>
    %41 = arith.mulf %40, %0 : vector<32x16xf32>
    %42 = arith.addf %38, %41 : vector<32x16xf32>
    %43 = vector.extract_strided_slice %1 {offsets = [0, 2], sizes = [32, 1], strides = [1, 1]} : vector<32x10xf32> to vector<32x1xf32>
    %44 = vector.broadcast %43 : vector<32x1xf32> to vector<32x16xf32>
    %45 = arith.mulf %44, %35 : vector<32x16xf32>
    %46 = arith.addf %42, %45 : vector<32x16xf32>
    %47 = vector.extract_strided_slice %1 {offsets = [0, 3], sizes = [32, 1], strides = [1, 1]} : vector<32x10xf32> to vector<32x1xf32>
    %48 = vector.broadcast %47 : vector<32x1xf32> to vector<32x16xf32>
    %49 = arith.mulf %48, %27 : vector<32x16xf32>
    %50 = vector.extract_strided_slice %1 {offsets = [0, 4], sizes = [32, 1], strides = [1, 1]} : vector<32x10xf32> to vector<32x1xf32>
    %51 = vector.broadcast %50 : vector<32x1xf32> to vector<32x16xf32>
    %52 = arith.mulf %51, %0 : vector<32x16xf32>
    %53 = arith.addf %49, %52 : vector<32x16xf32>
    %54 = vector.extract_strided_slice %1 {offsets = [0, 5], sizes = [32, 1], strides = [1, 1]} : vector<32x10xf32> to vector<32x1xf32>
    %55 = vector.broadcast %54 : vector<32x1xf32> to vector<32x16xf32>
    %56 = arith.mulf %55, %35 : vector<32x16xf32>
    %57 = arith.addf %53, %56 : vector<32x16xf32>
    %58 = vector.extract_strided_slice %1 {offsets = [0, 6], sizes = [32, 1], strides = [1, 1]} : vector<32x10xf32> to vector<32x1xf32>
    %59 = vector.broadcast %58 : vector<32x1xf32> to vector<32x16xf32>
    %60 = arith.mulf %59, %27 : vector<32x16xf32>
    %61 = vector.extract_strided_slice %1 {offsets = [0, 7], sizes = [32, 1], strides = [1, 1]} : vector<32x10xf32> to vector<32x1xf32>
    %62 = vector.broadcast %61 : vector<32x1xf32> to vector<32x16xf32>
    %63 = arith.mulf %62, %0 : vector<32x16xf32>
    %64 = arith.addf %60, %63 : vector<32x16xf32>
    %65 = vector.extract_strided_slice %1 {offsets = [0, 8], sizes = [32, 1], strides = [1, 1]} : vector<32x10xf32> to vector<32x1xf32>
    %66 = vector.broadcast %65 : vector<32x1xf32> to vector<32x16xf32>
    %67 = arith.mulf %66, %35 : vector<32x16xf32>
    %68 = arith.addf %64, %67 : vector<32x16xf32>
    %cst_9 = arith.constant 0.000000e+00 : f32
    %69 = vector.broadcast %cst_9 : f32 to vector<32x4xf32>
    %70 = vector.extract_strided_slice %46 {offsets = [0, 0], sizes = [32, 12], strides = [1, 1]} : vector<32x16xf32> to vector<32x12xf32>
    %71 = tpu.concatenate %69, %70 in 1 : vector<32x4xf32>, vector<32x12xf32> -> vector<32x16xf32>
    %72 = vector.extract_strided_slice %68 {offsets = [0, 4], sizes = [32, 12], strides = [1, 1]} : vector<32x16xf32> to vector<32x12xf32>
    %73 = tpu.concatenate %72, %69 in 1 : vector<32x12xf32>, vector<32x4xf32> -> vector<32x16xf32>
    %c0_10 = arith.constant 0 : index
    %c0_11 = arith.constant 0 : index
    %74 = vector.load %arg3[%c0_10, %c0_11] : memref<32x16xf32, #tpu.memory_space<vmem>>, vector<32x16xf32>
    %75 = vector.extract_strided_slice %1 {offsets = [0, 9], sizes = [32, 1], strides = [1, 1]} : vector<32x10xf32> to vector<32x1xf32>
    %76 = vector.broadcast %75 : vector<32x1xf32> to vector<32x16xf32>
    %77 = arith.addf %74, %76 : vector<32x16xf32>
    %78 = arith.addf %77, %57 : vector<32x16xf32>
    %79 = arith.addf %78, %71 : vector<32x16xf32>
    %80 = arith.addf %79, %73 : vector<32x16xf32>
    %c0_12 = arith.constant 0 : index
    %c0_13 = arith.constant 0 : index
    %81 = vector.load %arg4[%c0_12, %c0_13] : memref<32x16xf32, #tpu.memory_space<vmem>>, vector<32x16xf32>
    tpu.vector_store %arg4[%c0_12, %c0_13], %80 {strides = array<i32>} : memref<32x16xf32, #tpu.memory_space<vmem>>, vector<32x16xf32>,
    return
  }
  func.func @transform_0(%arg0: i32) -> (i32, i32) {
    %c0_i32 = arith.constant 0 : i32
    %c0_i32_0 = arith.constant 0 : i32
    return %arg0, %c0_i32 : i32, i32
  }
  func.func @transform_1(%arg0: i32) -> (i32, i32) {
    %c0_i32 = arith.constant 0 : i32
    %c0_i32_0 = arith.constant 0 : i32
    return %arg0, %c0_i32 : i32, i32
  }
  func.func @transform_2(%arg0: i32) -> (i32, i32) {
    %c0_i32 = arith.constant 0 : i32
    %c0_i32_0 = arith.constant 0 : i32
    return %arg0, %c0_i32 : i32, i32
  }
  func.func @transform_3(%arg0: i32) -> (i32, i32) {
    %c0_i32 = arith.constant 0 : i32
    %c0_i32_0 = arith.constant 0 : i32
    return %arg0, %c0_i32 : i32, i32
  }
}

module attributes {stable_mosaic.version = 11 : i64} {
  func.func @_kpa_fused_kernel(%arg0: i32, %arg1: memref<8x10xf32, #tpu.memory_space<vmem>>, %arg2: memref<8x256xf32, #tpu.memory_space<vmem>>, %arg3: memref<8x256xf32, #tpu.memory_space<vmem>>, %arg4: memref<8x256xf32, #tpu.memory_space<vmem>>) attributes {dimension_semantics = [#tpu.dimension_semantics<parallel>], iteration_bounds = array<i64: 2>, scalar_prefetch = 0 : i64, scratch_operands = 0 : i64, tpu.core_type = #tpu.core_type<tc>, window_params = [{transform_indices = @transform_0, window_bounds = array<i64: 8, 10>}, {transform_indices = @transform_1, window_bounds = array<i64: 8, 256>}, {transform_indices = @transform_2, window_bounds = array<i64: 8, 256>}, {transform_indices = @transform_3, window_bounds = array<i64: 8, 256>}]} {
    %c0 = arith.constant 0 : index
    %c0_0 = arith.constant 0 : index
    %0 = vector.load %arg2[%c0, %c0_0] : memref<8x256xf32, #tpu.memory_space<vmem>>, vector<8x256xf32>
    %c0_1 = arith.constant 0 : index
    %c0_2 = arith.constant 0 : index
    %1 = vector.load %arg1[%c0_1, %c0_2] : memref<8x10xf32, #tpu.memory_space<vmem>>, vector<8x10xf32>
    %2 = tpu.iota {dimensions = array<i32: 1>} : vector<1x256xi32>
    %c16_i32 = arith.constant 16 : i32
    %c0_i32 = arith.constant 0 : i32
    %3 = arith.cmpi eq, %c16_i32, %c0_i32 : i32
    %c1_i32 = arith.constant 1 : i32
    %4 = arith.select %3, %c1_i32, %c16_i32 : i32
    %5 = vector.broadcast %4 : i32 to vector<1x256xi32>
    %6 = arith.remsi %2, %5 : vector<1x256xi32>
    %c0_i32_3 = arith.constant 0 : i32
    %7 = vector.broadcast %c0_i32_3 : i32 to vector<1x256xi32>
    %8 = arith.cmpi ne, %6, %7 : vector<1x256xi32>
    %c0_i32_4 = arith.constant 0 : i32
    %9 = vector.broadcast %c0_i32_4 : i32 to vector<1x256xi32>
    %10 = arith.cmpi slt, %6, %9 : vector<1x256xi32>
    %c0_i32_5 = arith.constant 0 : i32
    %11 = arith.cmpi slt, %4, %c0_i32_5 : i32
    %12 = vector.broadcast %11 : i1 to vector<1x256xi1>
    %13 = vector.broadcast %12 : vector<1x256xi1> to vector<1x256xi1>
    %14 = arith.xori %10, %13 : vector<1x256xi1>
    %15 = arith.andi %14, %8 : vector<1x256xi1>
    %16 = vector.broadcast %4 : i32 to vector<1x256xi32>
    %17 = arith.addi %6, %16 : vector<1x256xi32>
    %18 = arith.select %15, %17, %6 : vector<1x256xi1>, vector<1x256xi32>
    %cst = arith.constant 0.000000e+00 : f32
    %19 = vector.broadcast %cst : f32 to vector<8x1xf32>
    %c1_i32_6 = arith.constant 1 : i32
    %20 = vector.broadcast %c1_i32_6 : i32 to vector<1x256xi32>
    %21 = arith.cmpi sge, %18, %20 : vector<1x256xi32>
    %22 = vector.extract_strided_slice %0 {offsets = [0, 0], sizes = [8, 255], strides = [1, 1]} : vector<8x256xf32> to vector<8x255xf32>
    %23 = tpu.concatenate %19, %22 in 1 : vector<8x1xf32>, vector<8x255xf32> -> vector<8x256xf32>
    %cst_7 = arith.constant 0.000000e+00 : f32
    %24 = vector.shape_cast %21 : vector<1x256xi1> to vector<1x256xi1>
    %25 = vector.broadcast %24 : vector<1x256xi1> to vector<8x256xi1>
    %26 = vector.broadcast %cst_7 : f32 to vector<8x256xf32>
    %27 = arith.select %25, %23, %26 : vector<8x256xi1>, vector<8x256xf32>
    %c14_i32 = arith.constant 14 : i32
    %28 = vector.broadcast %c14_i32 : i32 to vector<1x256xi32>
    %29 = arith.cmpi sle, %18, %28 : vector<1x256xi32>
    %30 = vector.extract_strided_slice %0 {offsets = [0, 1], sizes = [8, 255], strides = [1, 1]} : vector<8x256xf32> to vector<8x255xf32>
    %31 = tpu.concatenate %30, %19 in 1 : vector<8x255xf32>, vector<8x1xf32> -> vector<8x256xf32>
    %cst_8 = arith.constant 0.000000e+00 : f32
    %32 = vector.shape_cast %29 : vector<1x256xi1> to vector<1x256xi1>
    %33 = vector.broadcast %32 : vector<1x256xi1> to vector<8x256xi1>
    %34 = vector.broadcast %cst_8 : f32 to vector<8x256xf32>
    %35 = arith.select %33, %31, %34 : vector<8x256xi1>, vector<8x256xf32>
    %36 = vector.extract_strided_slice %1 {offsets = [0, 0], sizes = [8, 1], strides = [1, 1]} : vector<8x10xf32> to vector<8x1xf32>
    %37 = vector.broadcast %36 : vector<8x1xf32> to vector<8x256xf32>
    %38 = arith.mulf %37, %27 : vector<8x256xf32>
    %39 = vector.extract_strided_slice %1 {offsets = [0, 1], sizes = [8, 1], strides = [1, 1]} : vector<8x10xf32> to vector<8x1xf32>
    %40 = vector.broadcast %39 : vector<8x1xf32> to vector<8x256xf32>
    %41 = arith.mulf %40, %0 : vector<8x256xf32>
    %42 = arith.addf %38, %41 : vector<8x256xf32>
    %43 = vector.extract_strided_slice %1 {offsets = [0, 2], sizes = [8, 1], strides = [1, 1]} : vector<8x10xf32> to vector<8x1xf32>
    %44 = vector.broadcast %43 : vector<8x1xf32> to vector<8x256xf32>
    %45 = arith.mulf %44, %35 : vector<8x256xf32>
    %46 = arith.addf %42, %45 : vector<8x256xf32>
    %47 = vector.extract_strided_slice %1 {offsets = [0, 3], sizes = [8, 1], strides = [1, 1]} : vector<8x10xf32> to vector<8x1xf32>
    %48 = vector.broadcast %47 : vector<8x1xf32> to vector<8x256xf32>
    %49 = arith.mulf %48, %27 : vector<8x256xf32>
    %50 = vector.extract_strided_slice %1 {offsets = [0, 4], sizes = [8, 1], strides = [1, 1]} : vector<8x10xf32> to vector<8x1xf32>
    %51 = vector.broadcast %50 : vector<8x1xf32> to vector<8x256xf32>
    %52 = arith.mulf %51, %0 : vector<8x256xf32>
    %53 = arith.addf %49, %52 : vector<8x256xf32>
    %54 = vector.extract_strided_slice %1 {offsets = [0, 5], sizes = [8, 1], strides = [1, 1]} : vector<8x10xf32> to vector<8x1xf32>
    %55 = vector.broadcast %54 : vector<8x1xf32> to vector<8x256xf32>
    %56 = arith.mulf %55, %35 : vector<8x256xf32>
    %57 = arith.addf %53, %56 : vector<8x256xf32>
    %58 = vector.extract_strided_slice %1 {offsets = [0, 6], sizes = [8, 1], strides = [1, 1]} : vector<8x10xf32> to vector<8x1xf32>
    %59 = vector.broadcast %58 : vector<8x1xf32> to vector<8x256xf32>
    %60 = arith.mulf %59, %27 : vector<8x256xf32>
    %61 = vector.extract_strided_slice %1 {offsets = [0, 7], sizes = [8, 1], strides = [1, 1]} : vector<8x10xf32> to vector<8x1xf32>
    %62 = vector.broadcast %61 : vector<8x1xf32> to vector<8x256xf32>
    %63 = arith.mulf %62, %0 : vector<8x256xf32>
    %64 = arith.addf %60, %63 : vector<8x256xf32>
    %65 = vector.extract_strided_slice %1 {offsets = [0, 8], sizes = [8, 1], strides = [1, 1]} : vector<8x10xf32> to vector<8x1xf32>
    %66 = vector.broadcast %65 : vector<8x1xf32> to vector<8x256xf32>
    %67 = arith.mulf %66, %35 : vector<8x256xf32>
    %68 = arith.addf %64, %67 : vector<8x256xf32>
    %cst_9 = arith.constant 0.000000e+00 : f32
    %69 = vector.broadcast %cst_9 : f32 to vector<8x16xf32>
    %70 = vector.extract_strided_slice %46 {offsets = [0, 0], sizes = [8, 240], strides = [1, 1]} : vector<8x256xf32> to vector<8x240xf32>
    %71 = tpu.concatenate %69, %70 in 1 : vector<8x16xf32>, vector<8x240xf32> -> vector<8x256xf32>
    %72 = vector.extract_strided_slice %68 {offsets = [0, 16], sizes = [8, 240], strides = [1, 1]} : vector<8x256xf32> to vector<8x240xf32>
    %73 = tpu.concatenate %72, %69 in 1 : vector<8x240xf32>, vector<8x16xf32> -> vector<8x256xf32>
    %c0_10 = arith.constant 0 : index
    %c0_11 = arith.constant 0 : index
    %74 = vector.load %arg3[%c0_10, %c0_11] : memref<8x256xf32, #tpu.memory_space<vmem>>, vector<8x256xf32>
    %75 = vector.extract_strided_slice %1 {offsets = [0, 9], sizes = [8, 1], strides = [1, 1]} : vector<8x10xf32> to vector<8x1xf32>
    %76 = vector.broadcast %75 : vector<8x1xf32> to vector<8x256xf32>
    %77 = arith.addf %74, %76 : vector<8x256xf32>
    %78 = arith.addf %77, %57 : vector<8x256xf32>
    %79 = arith.addf %78, %71 : vector<8x256xf32>
    %80 = arith.addf %79, %73 : vector<8x256xf32>
    %c0_12 = arith.constant 0 : index
    %c0_13 = arith.constant 0 : index
    %81 = vector.load %arg4[%c0_12, %c0_13] : memref<8x256xf32, #tpu.memory_space<vmem>>, vector<8x256xf32>
    tpu.vector_store %arg4[%c0_12, %c0_13], %80 {strides = array<i32>} : memref<8x256xf32, #tpu.memory_space<vmem>>, vector<8x256xf32>,
    return
  }
  func.func @transform_0(%arg0: i32) -> (i32, i32) {
    %c0_i32 = arith.constant 0 : i32
    %c0_i32_0 = arith.constant 0 : i32
    return %arg0, %c0_i32 : i32, i32
  }
  func.func @transform_1(%arg0: i32) -> (i32, i32) {
    %c0_i32 = arith.constant 0 : i32
    %c0_i32_0 = arith.constant 0 : i32
    return %arg0, %c0_i32 : i32, i32
  }
  func.func @transform_2(%arg0: i32) -> (i32, i32) {
    %c0_i32 = arith.constant 0 : i32
    %c0_i32_0 = arith.constant 0 : i32
    return %arg0, %c0_i32 : i32, i32
  }
  func.func @transform_3(%arg0: i32) -> (i32, i32) {
    %c0_i32 = arith.constant 0 : i32
    %c0_i32_0 = arith.constant 0 : i32
    return %arg0, %c0_i32 : i32, i32
  }
}

module attributes {stable_mosaic.version = 11 : i64} {
  func.func @_kpa_fused_kernel(%arg0: i32, %arg1: memref<16x10xf32, #tpu.memory_space<vmem>>, %arg2: memref<16x64xf32, #tpu.memory_space<vmem>>, %arg3: memref<16x64xf32, #tpu.memory_space<vmem>>, %arg4: memref<16x64xf32, #tpu.memory_space<vmem>>) attributes {dimension_semantics = [#tpu.dimension_semantics<parallel>], iteration_bounds = array<i64: 2>, scalar_prefetch = 0 : i64, scratch_operands = 0 : i64, tpu.core_type = #tpu.core_type<tc>, window_params = [{transform_indices = @transform_0, window_bounds = array<i64: 16, 10>}, {transform_indices = @transform_1, window_bounds = array<i64: 16, 64>}, {transform_indices = @transform_2, window_bounds = array<i64: 16, 64>}, {transform_indices = @transform_3, window_bounds = array<i64: 16, 64>}]} {
    %c0 = arith.constant 0 : index
    %c0_0 = arith.constant 0 : index
    %0 = vector.load %arg2[%c0, %c0_0] : memref<16x64xf32, #tpu.memory_space<vmem>>, vector<16x64xf32>
    %c0_1 = arith.constant 0 : index
    %c0_2 = arith.constant 0 : index
    %1 = vector.load %arg1[%c0_1, %c0_2] : memref<16x10xf32, #tpu.memory_space<vmem>>, vector<16x10xf32>
    %2 = tpu.iota {dimensions = array<i32: 1>} : vector<1x64xi32>
    %c8_i32 = arith.constant 8 : i32
    %c0_i32 = arith.constant 0 : i32
    %3 = arith.cmpi eq, %c8_i32, %c0_i32 : i32
    %c1_i32 = arith.constant 1 : i32
    %4 = arith.select %3, %c1_i32, %c8_i32 : i32
    %5 = vector.broadcast %4 : i32 to vector<1x64xi32>
    %6 = arith.remsi %2, %5 : vector<1x64xi32>
    %c0_i32_3 = arith.constant 0 : i32
    %7 = vector.broadcast %c0_i32_3 : i32 to vector<1x64xi32>
    %8 = arith.cmpi ne, %6, %7 : vector<1x64xi32>
    %c0_i32_4 = arith.constant 0 : i32
    %9 = vector.broadcast %c0_i32_4 : i32 to vector<1x64xi32>
    %10 = arith.cmpi slt, %6, %9 : vector<1x64xi32>
    %c0_i32_5 = arith.constant 0 : i32
    %11 = arith.cmpi slt, %4, %c0_i32_5 : i32
    %12 = vector.broadcast %11 : i1 to vector<1x64xi1>
    %13 = vector.broadcast %12 : vector<1x64xi1> to vector<1x64xi1>
    %14 = arith.xori %10, %13 : vector<1x64xi1>
    %15 = arith.andi %14, %8 : vector<1x64xi1>
    %16 = vector.broadcast %4 : i32 to vector<1x64xi32>
    %17 = arith.addi %6, %16 : vector<1x64xi32>
    %18 = arith.select %15, %17, %6 : vector<1x64xi1>, vector<1x64xi32>
    %cst = arith.constant 0.000000e+00 : f32
    %19 = vector.broadcast %cst : f32 to vector<16x1xf32>
    %c1_i32_6 = arith.constant 1 : i32
    %20 = vector.broadcast %c1_i32_6 : i32 to vector<1x64xi32>
    %21 = arith.cmpi sge, %18, %20 : vector<1x64xi32>
    %22 = vector.extract_strided_slice %0 {offsets = [0, 0], sizes = [16, 63], strides = [1, 1]} : vector<16x64xf32> to vector<16x63xf32>
    %23 = tpu.concatenate %19, %22 in 1 : vector<16x1xf32>, vector<16x63xf32> -> vector<16x64xf32>
    %cst_7 = arith.constant 0.000000e+00 : f32
    %24 = vector.shape_cast %21 : vector<1x64xi1> to vector<1x64xi1>
    %25 = vector.broadcast %24 : vector<1x64xi1> to vector<16x64xi1>
    %26 = vector.broadcast %cst_7 : f32 to vector<16x64xf32>
    %27 = arith.select %25, %23, %26 : vector<16x64xi1>, vector<16x64xf32>
    %c6_i32 = arith.constant 6 : i32
    %28 = vector.broadcast %c6_i32 : i32 to vector<1x64xi32>
    %29 = arith.cmpi sle, %18, %28 : vector<1x64xi32>
    %30 = vector.extract_strided_slice %0 {offsets = [0, 1], sizes = [16, 63], strides = [1, 1]} : vector<16x64xf32> to vector<16x63xf32>
    %31 = tpu.concatenate %30, %19 in 1 : vector<16x63xf32>, vector<16x1xf32> -> vector<16x64xf32>
    %cst_8 = arith.constant 0.000000e+00 : f32
    %32 = vector.shape_cast %29 : vector<1x64xi1> to vector<1x64xi1>
    %33 = vector.broadcast %32 : vector<1x64xi1> to vector<16x64xi1>
    %34 = vector.broadcast %cst_8 : f32 to vector<16x64xf32>
    %35 = arith.select %33, %31, %34 : vector<16x64xi1>, vector<16x64xf32>
    %36 = vector.extract_strided_slice %1 {offsets = [0, 0], sizes = [16, 1], strides = [1, 1]} : vector<16x10xf32> to vector<16x1xf32>
    %37 = vector.broadcast %36 : vector<16x1xf32> to vector<16x64xf32>
    %38 = arith.mulf %37, %27 : vector<16x64xf32>
    %39 = vector.extract_strided_slice %1 {offsets = [0, 1], sizes = [16, 1], strides = [1, 1]} : vector<16x10xf32> to vector<16x1xf32>
    %40 = vector.broadcast %39 : vector<16x1xf32> to vector<16x64xf32>
    %41 = arith.mulf %40, %0 : vector<16x64xf32>
    %42 = arith.addf %38, %41 : vector<16x64xf32>
    %43 = vector.extract_strided_slice %1 {offsets = [0, 2], sizes = [16, 1], strides = [1, 1]} : vector<16x10xf32> to vector<16x1xf32>
    %44 = vector.broadcast %43 : vector<16x1xf32> to vector<16x64xf32>
    %45 = arith.mulf %44, %35 : vector<16x64xf32>
    %46 = arith.addf %42, %45 : vector<16x64xf32>
    %47 = vector.extract_strided_slice %1 {offsets = [0, 3], sizes = [16, 1], strides = [1, 1]} : vector<16x10xf32> to vector<16x1xf32>
    %48 = vector.broadcast %47 : vector<16x1xf32> to vector<16x64xf32>
    %49 = arith.mulf %48, %27 : vector<16x64xf32>
    %50 = vector.extract_strided_slice %1 {offsets = [0, 4], sizes = [16, 1], strides = [1, 1]} : vector<16x10xf32> to vector<16x1xf32>
    %51 = vector.broadcast %50 : vector<16x1xf32> to vector<16x64xf32>
    %52 = arith.mulf %51, %0 : vector<16x64xf32>
    %53 = arith.addf %49, %52 : vector<16x64xf32>
    %54 = vector.extract_strided_slice %1 {offsets = [0, 5], sizes = [16, 1], strides = [1, 1]} : vector<16x10xf32> to vector<16x1xf32>
    %55 = vector.broadcast %54 : vector<16x1xf32> to vector<16x64xf32>
    %56 = arith.mulf %55, %35 : vector<16x64xf32>
    %57 = arith.addf %53, %56 : vector<16x64xf32>
    %58 = vector.extract_strided_slice %1 {offsets = [0, 6], sizes = [16, 1], strides = [1, 1]} : vector<16x10xf32> to vector<16x1xf32>
    %59 = vector.broadcast %58 : vector<16x1xf32> to vector<16x64xf32>
    %60 = arith.mulf %59, %27 : vector<16x64xf32>
    %61 = vector.extract_strided_slice %1 {offsets = [0, 7], sizes = [16, 1], strides = [1, 1]} : vector<16x10xf32> to vector<16x1xf32>
    %62 = vector.broadcast %61 : vector<16x1xf32> to vector<16x64xf32>
    %63 = arith.mulf %62, %0 : vector<16x64xf32>
    %64 = arith.addf %60, %63 : vector<16x64xf32>
    %65 = vector.extract_strided_slice %1 {offsets = [0, 8], sizes = [16, 1], strides = [1, 1]} : vector<16x10xf32> to vector<16x1xf32>
    %66 = vector.broadcast %65 : vector<16x1xf32> to vector<16x64xf32>
    %67 = arith.mulf %66, %35 : vector<16x64xf32>
    %68 = arith.addf %64, %67 : vector<16x64xf32>
    %cst_9 = arith.constant 0.000000e+00 : f32
    %69 = vector.broadcast %cst_9 : f32 to vector<16x8xf32>
    %70 = vector.extract_strided_slice %46 {offsets = [0, 0], sizes = [16, 56], strides = [1, 1]} : vector<16x64xf32> to vector<16x56xf32>
    %71 = tpu.concatenate %69, %70 in 1 : vector<16x8xf32>, vector<16x56xf32> -> vector<16x64xf32>
    %72 = vector.extract_strided_slice %68 {offsets = [0, 8], sizes = [16, 56], strides = [1, 1]} : vector<16x64xf32> to vector<16x56xf32>
    %73 = tpu.concatenate %72, %69 in 1 : vector<16x56xf32>, vector<16x8xf32> -> vector<16x64xf32>
    %c0_10 = arith.constant 0 : index
    %c0_11 = arith.constant 0 : index
    %74 = vector.load %arg3[%c0_10, %c0_11] : memref<16x64xf32, #tpu.memory_space<vmem>>, vector<16x64xf32>
    %75 = vector.extract_strided_slice %1 {offsets = [0, 9], sizes = [16, 1], strides = [1, 1]} : vector<16x10xf32> to vector<16x1xf32>
    %76 = vector.broadcast %75 : vector<16x1xf32> to vector<16x64xf32>
    %77 = arith.addf %74, %76 : vector<16x64xf32>
    %78 = arith.addf %77, %57 : vector<16x64xf32>
    %79 = arith.addf %78, %71 : vector<16x64xf32>
    %80 = arith.addf %79, %73 : vector<16x64xf32>
    %c0_12 = arith.constant 0 : index
    %c0_13 = arith.constant 0 : index
    %81 = vector.load %arg4[%c0_12, %c0_13] : memref<16x64xf32, #tpu.memory_space<vmem>>, vector<16x64xf32>
    tpu.vector_store %arg4[%c0_12, %c0_13], %80 {strides = array<i32>} : memref<16x64xf32, #tpu.memory_space<vmem>>, vector<16x64xf32>,
    return
  }
  func.func @transform_0(%arg0: i32) -> (i32, i32) {
    %c0_i32 = arith.constant 0 : i32
    %c0_i32_0 = arith.constant 0 : i32
    return %arg0, %c0_i32 : i32, i32
  }
  func.func @transform_1(%arg0: i32) -> (i32, i32) {
    %c0_i32 = arith.constant 0 : i32
    %c0_i32_0 = arith.constant 0 : i32
    return %arg0, %c0_i32 : i32, i32
  }
  func.func @transform_2(%arg0: i32) -> (i32, i32) {
    %c0_i32 = arith.constant 0 : i32
    %c0_i32_0 = arith.constant 0 : i32
    return %arg0, %c0_i32 : i32, i32
  }
  func.func @transform_3(%arg0: i32) -> (i32, i32) {
    %c0_i32 = arith.constant 0 : i32
    %c0_i32_0 = arith.constant 0 : i32
    return %arg0, %c0_i32 : i32, i32
  }
}

</mosaic_0001>

<llo_original>
// kernel: decoder_forward.5
$region0: #{decoder_forward.5}
  #allocation0 [shape = 'u32[]', space=smem, size = 0x4, offset = 0x4, fixed_abs, tag = 'smem constant byte address 0x4 - core index']
  #allocation1 [shape = 'u32[144,128]{1,0:T(1,128)}', space=vmem, size = 0x12000, scoped, tag = 'internal scratch']
  %s0 = inlined_call_operand.vmem [shape: f32[16,10], index: 0, kind: input, shape index: {}]
  %s1 = inlined_call_operand.vmem [shape: f32[16,256], index: 1, kind: input, shape index: {}]
  %s2 = inlined_call_operand.vmem [shape: f32[16,256], index: 2, kind: input, shape index: {}, may-alias: {2,3}]
  %s3 = inlined_call_operand.vmem [shape: f32[16,256], index: 3, kind: output, shape index: {}, may-alias: {2,3}]
  %s4 = sld [smem:[#allocation0]]
  $region45: #{decoder_forward.5} parent=0
    _
  %s6 = ssub.s32 1, %s4
  %s7 = scalar_select 0, %s6, %s4
  loop: start=0, step=1, limit=4
  $region2: #{decoder_forward.5} parent=0 // loop_pre_header
    _
  $region3: #{decoder_forward.5} parent=0 // loop_header
    %s9 = sphi 0, %s13
    %p10 = scmp.ge.s32.totalorder %s9, 4
    %s19 = sphi 0, %s21
    %s22 = sphi 0, %s19
    %s23 = sphi 0, %s22
    %s39 = sphi 0, %s23
    %s45 = sphi 0, %s47
    %s48 = sphi 0, %s45
    %s49 = sphi 0, %s48
    %s65 = sphi 0, %s49
    %s71 = sphi 0, %s73
    %s74 = sphi 0, %s71
    %s75 = sphi 0, %s74
    %s91 = sphi 0, %s75
    %s97 = sphi 0, %s99
    %s100 = sphi 0, %s97
    %s101 = sphi 0, %s100
    %s117 = sphi 0, %s101
  $region4: #{decoder_forward.5} parent=0 // loop_header_branch
    %12 = sbr.rel (%p10) target = $region8
  $region5: #{decoder_forward.5} parent=0 // loop_body
    %s14 = ssub.s32 %s9, 1
    %s15 = ssub.s32 %s9, 2
    %s16 = sadd.s32 %s9, 1
    %s17 = ssub.s32 %s9, %s16
    %p18 = scmp.eq.s32.totalorder %s17, 0
    %s20 = sadd.s32 %s19, 1
    %s21 = scalar_select %p18, %s19, %s20
    %p24 = pneg %p18
    %p25 = scmp.eq.s32.totalorder %s9, 1
    %p26 = por %p24, %p25
    %p27 = scmp.ne.s32.totalorder %s19, %s22
    %p28 = scmp.eq.s32.totalorder %s9, 0
    %p29 = por %p27, %p28
    %p30 = scmp.ne.s32.totalorder %s19, %s22
    %p31 = scmp.eq.s32.totalorder %s14, 1
    %p32 = por %p30, %p31
    %p33 = scmp.ne.s32.totalorder %s22, %s23
    %p34 = scmp.eq.s32.totalorder %s14, 0
    %p35 = por %p33, %p34
    %p36 = scmp.ne.s32.totalorder %s22, %s23
    %p37 = scmp.eq.s32.totalorder %s15, 1
    %p38 = por %p36, %p37
    %p40 = scmp.ne.s32.totalorder %s23, %s39
    %p41 = scmp.eq.s32.totalorder %s15, 0
    %p42 = por %p40, %p41
    %s43 = ssub.s32 %s9, %s16
    %p44 = scmp.eq.s32.totalorder %s43, 0
    %s46 = sadd.s32 %s45, 1
    %s47 = scalar_select %p44, %s45, %s46
    %p50 = pneg %p44
    %p51 = scmp.eq.s32.totalorder %s9, 1
    %p52 = por %p50, %p51
    %p53 = scmp.ne.s32.totalorder %s45, %s48
    %p54 = scmp.eq.s32.totalorder %s9, 0
    %p55 = por %p53, %p54
    %p56 = scmp.ne.s32.totalorder %s45, %s48
    %p57 = scmp.eq.s32.totalorder %s14, 1
    %p58 = por %p56, %p57
    %p59 = scmp.ne.s32.totalorder %s48, %s49
    %p60 = scmp.eq.s32.totalorder %s14, 0
    %p61 = por %p59, %p60
    %p62 = scmp.ne.s32.totalorder %s48, %s49
    %p63 = scmp.eq.s32.totalorder %s15, 1
    %p64 = por %p62, %p63
    %p66 = scmp.ne.s32.totalorder %s49, %s65
    %p67 = scmp.eq.s32.totalorder %s15, 0
    %p68 = por %p66, %p67
    %s69 = ssub.s32 %s9, %s16
    %p70 = scmp.eq.s32.totalorder %s69, 0
    %s72 = sadd.s32 %s71, 1
    %s73 = scalar_select %p70, %s71, %s72
    %p76 = pneg %p70
    %p77 = scmp.eq.s32.totalorder %s9, 1
    %p78 = por %p76, %p77
    %p79 = scmp.ne.s32.totalorder %s71, %s74
    %p80 = scmp.eq.s32.totalorder %s9, 0
    %p81 = por %p79, %p80
    %p82 = scmp.ne.s32.totalorder %s71, %s74
    %p83 = scmp.eq.s32.totalorder %s14, 1
    %p84 = por %p82, %p83
    %p85 = scmp.ne.s32.totalorder %s74, %s75
    %p86 = scmp.eq.s32.totalorder %s14, 0
    %p87 = por %p85, %p86
    %p88 = scmp.ne.s32.totalorder %s74, %s75
    %p89 = scmp.eq.s32.totalorder %s15, 1
    %p90 = por %p88, %p89
    %p92 = scmp.ne.s32.totalorder %s75, %s91
    %p93 = scmp.eq.s32.totalorder %s15, 0
    %p94 = por %p92, %p93
    %s95 = ssub.s32 %s9, %s16
    %p96 = scmp.eq.s32.totalorder %s95, 0
    %s98 = sadd.s32 %s97, 1
    %s99 = scalar_select %p96, %s97, %s98
    %p102 = pneg %p96
    %p103 = scmp.eq.s32.totalorder %s9, 1
    %p104 = por %p102, %p103
    %p105 = scmp.ne.s32.totalorder %s97, %s100
    %p106 = scmp.eq.s32.totalorder %s9, 0
    %p107 = por %p105, %p106
    %p108 = scmp.ne.s32.totalorder %s97, %s100
    %p109 = scmp.eq.s32.totalorder %s14, 1
    %p110 = por %p108, %p109
    %p111 = scmp.ne.s32.totalorder %s100, %s101
    %p112 = scmp.eq.s32.totalorder %s14, 0
    %p113 = por %p111, %p112
    %p114 = scmp.ne.s32.totalorder %s100, %s101
    %p115 = scmp.eq.s32.totalorder %s15, 1
    %p116 = por %p114, %p115
    %p118 = scmp.ne.s32.totalorder %s101, %s117
    %p119 = scmp.eq.s32.totalorder %s15, 0
    %p120 = por %p118, %p119
    %p121 = scmp.le.s32.totalorder 1, %s9
    %p122 = scmp.lt.s32.totalorder %s9, 3
    %p123 = pnand %p121, %p122
    %p124 = pneg %p123
    // Predicated region
    $region9: #{decoder_forward.5} parent=5 // pred_check
      _
    $region10: #{decoder_forward.5} parent=5 // pred_check_branch
      %126 = sbr.rel (%p123) target = $region12
    $region11: #{decoder_forward.5} parent=5 // pred_region
      %s127 = ssub.s32 %s9, 1
    $region12: #{decoder_forward.5} parent=5 // pred_fallthru
      _
    %p128 = scmp.lt.s32.totalorder %s9, 2
    // Predicated region
    $region13: #{decoder_forward.5} parent=5 // pred_check
      %p129 = pneg %p128
    $region14: #{decoder_forward.5} parent=5 // pred_check_branch
      %131 = sbr.rel (%p129) target = $region16
    $region15: #{decoder_forward.5} parent=5 // pred_region
      // Predicated region
      $region17: #{decoder_forward.5} parent=15 // pred_check
        %p132 = pneg %p29
      $region18: #{decoder_forward.5} parent=15 // pred_check_branch
        %134 = sbr.rel (%p132) target = $region20
      $region19: #{decoder_forward.5} parent=15 // pred_region
        %p135 = scmp.lt.s32.totalorder %s9, 1
        %s136 = scalar_select %p135, %s9, 1
        %s137 = smul.addr %s136, 8
        %s138 = scalar_lea.vmem %s0, %s137
      $region20: #{decoder_forward.5} parent=15 // pred_fallthru
        _
      // Predicated region
      $region21: #{decoder_forward.5} parent=15 // pred_check
        %p139 = pneg %p55
      $region22: #{decoder_forward.5} parent=15 // pred_check_branch
        %141 = sbr.rel (%p139) target = $region24
      $region23: #{decoder_forward.5} parent=15 // pred_region
        %p142 = scmp.lt.s32.totalorder %s9, 1
        %s143 = scalar_select %p142, %s9, 1
        %s144 = smul.addr %s143, 2
        %s145 = smul.addr %s144, 8
        %s146 = scalar_lea.vmem %s1, %s145
      $region24: #{decoder_forward.5} parent=15 // pred_fallthru
        _
      // Predicated region
      $region25: #{decoder_forward.5} parent=15 // pred_check
        %p147 = pneg %p81
      $region26: #{decoder_forward.5} parent=15 // pred_check_branch
        %149 = sbr.rel (%p147) target = $region28
      $region27: #{decoder_forward.5} parent=15 // pred_region
        %p150 = scmp.lt.s32.totalorder %s9, 1
        %s151 = scalar_select %p150, %s9, 1
        %s152 = smul.addr %s151, 2
        %s153 = smul.addr %s152, 8
        %s154 = scalar_lea.vmem %s2, %s153
      $region28: #{decoder_forward.5} parent=15 // pred_fallthru
        _
    $region16: #{decoder_forward.5} parent=5 // pred_fallthru
      _
    %p155 = scmp.le.s32.totalorder 1, %s9
    %p156 = scmp.lt.s32.totalorder %s9, 3
    %p157 = pnand %p155, %p156
    %p158 = pneg %p157
    // Predicated region
    $region29: #{decoder_forward.5} parent=5 // pred_check
      _
    $region30: #{decoder_forward.5} parent=5 // pred_check_branch
      %160 = sbr.rel (%p157) target = $region32
    $region31: #{decoder_forward.5} parent=5 // pred_region
      %s161 = ssub.s32 %s9, 1
      %p162 = scmp.lt.s32.totalorder %s14, 1
      %s163 = scalar_select %p162, %s14, 1
      %s164 = smul.addr %s163, 8
      %s165 = scalar_lea.vmem %s0, %s164
      %p166 = pneg %p35
      %p167 = pneg %p32
      %p168 = scmp.lt.s32.totalorder %s14, 1
      %s169 = scalar_select %p168, %s14, 1
      %s170 = smul.addr %s169, 2
      %s171 = smul.addr %s170, 8
      %s172 = scalar_lea.vmem %s1, %s171
      %p173 = pneg %p61
      %p174 = pneg %p58
      %p175 = scmp.lt.s32.totalorder %s14, 1
      %s176 = scalar_select %p175, %s14, 1
      %s177 = smul.addr %s176, 2
      %s178 = smul.addr %s177, 8
      %s179 = scalar_lea.vmem %s2, %s178
      %p180 = pneg %p87
      %p181 = pneg %p84
      %p182 = pneg %p113
      %p183 = pneg %p110
      %p184 = scmp.lt.s32.totalorder %s14, 1
      %s185 = scalar_select %p184, %s14, 1
      %s186 = smul.addr %s185, 2
      %s187 = smul.addr %s186, 8
      %s188 = scalar_lea.vmem %s3, %s187
      %p189 = scmp.lt.s32.totalorder %s14, 1
      %s190 = scalar_select %p189, %s14, 1
      %s191 = smul.addr %s190, 8
      %s192 = scalar_lea.vmem %s0, %s191
      %p193 = scmp.lt.s32.totalorder %s14, 1
      %s194 = scalar_select %p193, %s14, 1
      %s195 = smul.addr %s194, 2
      %s196 = smul.addr %s195, 8
      %s197 = scalar_lea.vmem %s1, %s196
      %p198 = scmp.lt.s32.totalorder %s14, 1
      %s199 = scalar_select %p198, %s14, 1
      %s200 = smul.addr %s199, 2
      %s201 = smul.addr %s200, 8
      %s202 = scalar_lea.vmem %s2, %s201
      %p203 = scmp.lt.s32.totalorder %s14, 1
      %s204 = scalar_select %p203, %s14, 1
      %s205 = smul.addr %s204, 2
      %s206 = smul.addr %s205, 8
      %s207 = scalar_lea.vmem %s3, %s206
      %v208 = vld [vmem:[%s197] sm:$0xff]
      %v209 = vld [vmem:[%s197 + $0x8] sm:$0xff]
      %v210 = vld [vmem:[%s192] sm:$0xff]
      %v211 = vlaneseq
      %v212 = vand.u32 %v211, 127
      %v213 = vadd.s32 %v212, 128
      %vm214 = vcmp.lt.s32.totalorder %v212, 0
      %v215 = vsub.s32 0, %v212
      %v216 = vsel %vm214, %v215, %v212
      %v217 = vshrl.u32 %v216, 4
      %v218 = vand.u32 %v216, 15
      %v219 = vsub.s32 0, %v218
      %v220 = vsel %vm214, %v219, %v218
      %vm221 = vcmp.lt.s32.totalorder %v213, 0
      %v222 = vsub.s32 0, %v213
      %v223 = vsel %vm221, %v222, %v213
      %v224 = vshrl.u32 %v223, 4
      %v225 = vand.u32 %v223, 15
      %v226 = vsub.s32 0, %v225
      %v227 = vsel %vm221, %v226, %v225
      %vm228 = vcmp.ne.s32.totalorder %v220, 0
      %vm229 = vcmp.ne.s32.totalorder %v227, 0
      %vm230 = vcmp.lt.s32.totalorder %v220, 0
      %vm231 = vcmp.lt.s32.totalorder %v227, 0
      %vm232 = vmand %vm230, %vm228
      %vm233 = vmand %vm231, %vm229
      %v234 = vadd.s32 %v220, 16
      %v235 = vadd.s32 %v227, 16
      %v236 = vsel %vm232, %v234, %v220
      %v237 = vsel %vm233, %v235, %v227
      %vm238 = vcmp.ge.s32.totalorder %v236, 1
      %vm239 = vcmp.ge.s32.totalorder %v237, 1
      %242 = vrot.lane.b32.xlu0 %v208, 1
      %v243 = vpop.permute.xlu0 %242
      %244 = vrot.lane.b32.xlu0 %v209, 1
      %v245 = vpop.permute.xlu0 %244
      %vm246 = vcmask 7168
      %v247 = vsel %vm246, %v243, %v245
      %v250 = vsel %vm246, 0.0, %v243
      %v251 = vsel %vm238, 1, 0
      %v252 = vsel %vm239, 1, 0
      %vm253 = vcmp.eq.s32.totalorder %v251, 1
      %vm254 = vcmp.eq.s32.totalorder %v252, 1
      %v255 = vsel %vm253, %v250, 0.0
      %v256 = vsel %vm254, %v247, 0.0
      %vm257 = vcmp.le.s32.totalorder %v236, 14
      %vm258 = vcmp.le.s32.totalorder %v237, 14
      %259 = vrot.lane.b32.xlu0 %v208, 127
      %v260 = vpop.permute.xlu0 %259
      %261 = vrot.lane.b32.xlu0 %v209, 127
      %v262 = vpop.permute.xlu0 %261
      %vm263 = vcmask 1039360
      %v264 = vsel %vm263, %v260, %v262
      %v267 = vsel %vm263, %v262, 0.0
      %v268 = vsel %vm257, 1, 0
      %v269 = vsel %vm258, 1, 0
      %vm270 = vcmp.eq.s32.totalorder %v268, 1
      %vm271 = vcmp.eq.s32.totalorder %v269, 1
      %v272 = vsel %vm270, %v264, 0.0
      %v273 = vsel %vm271, %v267, 0.0
      %275 = vset.pattern.permute.xlu0 0
      %276 = vperm.xlu0 %275, %v210
      %v277 = vpop.permute.xlu0 %276
      %v279 = vmul.f32 %v277, %v255
      %v280 = vmul.f32 %v277, %v256
      %281 = vset.pattern.permute.xlu0 1
      %282 = vperm.xlu0 %281, %v210
      %v283 = vpop.permute.xlu0 %282
      %v285 = vmul.f32 %v283, %v208
      %v286 = vmul.f32 %v283, %v209
      %v287 = vadd.f32 %v279, %v285
      %v288 = vadd.f32 %v280, %v286
      %289 = vset.pattern.permute.xlu0 2
      %290 = vperm.xlu0 %289, %v210
      %v291 = vpop.permute.xlu0 %290
      %v293 = vmul.f32 %v291, %v272
      %v294 = vmul.f32 %v291, %v273
      %v295 = vadd.f32 %v287, %v293
      %v296 = vadd.f32 %v288, %v294
      %297 = vset.pattern.permute.xlu0 3
      %298 = vperm.xlu0 %297, %v210
      %v299 = vpop.permute.xlu0 %298
      %v301 = vmul.f32 %v299, %v255
      %v302 = vmul.f32 %v299, %v256
      %303 = vset.pattern.permute.xlu0 4
      %304 = vperm.xlu0 %303, %v210
      %v305 = vpop.permute.xlu0 %304
      %v307 = vmul.f32 %v305, %v208
      %v308 = vmul.f32 %v305, %v209
      %v309 = vadd.f32 %v301, %v307
      %v310 = vadd.f32 %v302, %v308
      %311 = vset.pattern.permute.xlu0 5
      %312 = vperm.xlu0 %311, %v210
      %v313 = vpop.permute.xlu0 %312
      %v315 = vmul.f32 %v313, %v272
      %v316 = vmul.f32 %v313, %v273
      %v317 = vadd.f32 %v309, %v315
      %v318 = vadd.f32 %v310, %v316
      %319 = vset.pattern.permute.xlu0 6
      %320 = vperm.xlu0 %319, %v210
      %v321 = vpop.permute.xlu0 %320
      %v323 = vmul.f32 %v321, %v255
      %v324 = vmul.f32 %v321, %v256
      %325 = vset.pattern.permute.xlu0 7
      %326 = vperm.xlu0 %325, %v210
      %v327 = vpop.permute.xlu0 %326
      %v329 = vmul.f32 %v327, %v208
      %v330 = vmul.f32 %v327, %v209
      %v331 = vadd.f32 %v323, %v329
      %v332 = vadd.f32 %v324, %v330
      %333 = vset.pattern.permute.xlu0 8
      %334 = vperm.xlu0 %333, %v210
      %v335 = vpop.permute.xlu0 %334
      %v337 = vmul.f32 %v335, %v272
      %v338 = vmul.f32 %v335, %v273
      %v339 = vadd.f32 %v331, %v337
      %v340 = vadd.f32 %v332, %v338
      %343 = vrot.lane.b32.xlu0 %v295, 16
      %v344 = vpop.permute.xlu0 %343
      %345 = vrot.lane.b32.xlu0 %v296, 16
      %v346 = vpop.permute.xlu0 %345
      %vm347 = vcmask 130048
      %v348 = vsel %vm347, %v344, %v346
      %v351 = vsel %vm347, 0.0, %v344
      %354 = vrot.lane.b32.xlu0 %v339, 112
      %v355 = vpop.permute.xlu0 %354
      %356 = vrot.lane.b32.xlu0 %v340, 112
      %v357 = vpop.permute.xlu0 %356
      %vm358 = vcmask 916480
      %v359 = vsel %vm358, %v355, %v357
      %v362 = vsel %vm358, %v357, 0.0
      %v363 = vld [vmem:[%s202] sm:$0xff]
      %v364 = vld [vmem:[%s202 + $0x8] sm:$0xff]
      %365 = vset.pattern.permute.xlu0 9
      %366 = vperm.xlu0 %365, %v210
      %v367 = vpop.permute.xlu0 %366
      %v369 = vadd.f32 %v363, %v367
      %v370 = vadd.f32 %v364, %v367
      %v371 = vadd.f32 %v369, %v317
      %v372 = vadd.f32 %v370, %v318
      %v373 = vadd.f32 %v371, %v351
      %v374 = vadd.f32 %v372, %v348
      %v375 = vadd.f32 %v373, %v359
      %v376 = vadd.f32 %v374, %v362
      %377 = vst [vmem:[%s207] sm:$0xff] %v375
      %378 = vst [vmem:[%s207 + $0x8] sm:$0xff] %v376
      %p379 = scmp.lt.s32.totalorder %s14, 1
      %s380 = scalar_select %p379, %s14, 1
      %s381 = smul.addr %s380, 2
      %s382 = smul.addr %s381, 8
      %s383 = scalar_lea.vmem %s3, %s382
      // Predicated region
      $region33: #{decoder_forward.5} parent=31 // pred_check
        %p384 = pneg %p110
      $region34: #{decoder_forward.5} parent=31 // pred_check_branch
        %386 = sbr.rel (%p384) target = $region36
      $region35: #{decoder_forward.5} parent=31 // pred_region
        _
      $region36: #{decoder_forward.5} parent=31 // pred_fallthru
        _
    $region32: #{decoder_forward.5} parent=5 // pred_fallthru
      _
    %p387 = scmp.le.s32.totalorder 2, %s9
    // Predicated region
    $region37: #{decoder_forward.5} parent=5 // pred_check
      %p388 = pneg %p387
    $region38: #{decoder_forward.5} parent=5 // pred_check_branch
      %390 = sbr.rel (%p388) target = $region40
    $region39: #{decoder_forward.5} parent=5 // pred_region
      %s391 = ssub.s32 %s9, 2
      // Predicated region
      $region41: #{decoder_forward.5} parent=39 // pred_check
        %p392 = pneg %p116
      $region42: #{decoder_forward.5} parent=39 // pred_check_branch
        %394 = sbr.rel (%p392) target = $region44
      $region43: #{decoder_forward.5} parent=39 // pred_region
        %p395 = scmp.lt.s32.totalorder %s15, 1
        %s396 = scalar_select %p395, %s15, 1
        %s397 = smul.addr %s396, 2
        %s398 = smul.addr %s397, 8
        %s399 = scalar_lea.vmem %s3, %s398
      $region44: #{decoder_forward.5} parent=39 // pred_fallthru
        _
    $region40: #{decoder_forward.5} parent=5 // pred_fallthru
      _
  $region6: #{decoder_forward.5} parent=0 // loop_footer
    %s13 = sadd.s32 1, %s9
  $region7: #{decoder_forward.5} parent=0 // loop_footer_branch
    %8 = sbr.rel target = $region3
  $region8: #{decoder_forward.5} parent=0 // loop_exit
    _

// kernel: decoder_forward.3
$region0: #{decoder_forward.3}
  #allocation0 [shape = 'u32[]', space=smem, size = 0x4, offset = 0x4, fixed_abs, tag = 'smem constant byte address 0x4 - core index']
  #allocation1 [shape = 'u32[144,128]{1,0:T(1,128)}', space=vmem, size = 0x12000, scoped, tag = 'internal scratch']
  %s0 = inlined_call_operand.vmem [shape: f32[64,10], index: 0, kind: input, shape index: {}]
  %s1 = inlined_call_operand.vmem [shape: f32[64,16], index: 1, kind: input, shape index: {}]
  %s2 = inlined_call_operand.vmem [shape: f32[64,16], index: 2, kind: input, shape index: {}, may-alias: {2,3}]
  %s3 = inlined_call_operand.vmem [shape: f32[64,16], index: 3, kind: output, shape index: {}, may-alias: {2,3}]
  %s4 = sld [smem:[#allocation0]]
  $region45: #{decoder_forward.3} parent=0
    _
  %s6 = ssub.s32 1, %s4
  %s7 = scalar_select 0, %s6, %s4
  loop: start=0, step=1, limit=4
  $region2: #{decoder_forward.3} parent=0 // loop_pre_header
    _
  $region3: #{decoder_forward.3} parent=0 // loop_header
    %s9 = sphi 0, %s13
    %p10 = scmp.ge.s32.totalorder %s9, 4
    %s19 = sphi 0, %s21
    %s22 = sphi 0, %s19
    %s23 = sphi 0, %s22
    %s39 = sphi 0, %s23
    %s45 = sphi 0, %s47
    %s48 = sphi 0, %s45
    %s49 = sphi 0, %s48
    %s65 = sphi 0, %s49
    %s71 = sphi 0, %s73
    %s74 = sphi 0, %s71
    %s75 = sphi 0, %s74
    %s91 = sphi 0, %s75
    %s97 = sphi 0, %s99
    %s100 = sphi 0, %s97
    %s101 = sphi 0, %s100
    %s117 = sphi 0, %s101
  $region4: #{decoder_forward.3} parent=0 // loop_header_branch
    %12 = sbr.rel (%p10) target = $region8
  $region5: #{decoder_forward.3} parent=0 // loop_body
    %s14 = ssub.s32 %s9, 1
    %s15 = ssub.s32 %s9, 2
    %s16 = sadd.s32 %s9, 1
    %s17 = ssub.s32 %s9, %s16
    %p18 = scmp.eq.s32.totalorder %s17, 0
    %s20 = sadd.s32 %s19, 1
    %s21 = scalar_select %p18, %s19, %s20
    %p24 = pneg %p18
    %p25 = scmp.eq.s32.totalorder %s9, 1
    %p26 = por %p24, %p25
    %p27 = scmp.ne.s32.totalorder %s19, %s22
    %p28 = scmp.eq.s32.totalorder %s9, 0
    %p29 = por %p27, %p28
    %p30 = scmp.ne.s32.totalorder %s19, %s22
    %p31 = scmp.eq.s32.totalorder %s14, 1
    %p32 = por %p30, %p31
    %p33 = scmp.ne.s32.totalorder %s22, %s23
    %p34 = scmp.eq.s32.totalorder %s14, 0
    %p35 = por %p33, %p34
    %p36 = scmp.ne.s32.totalorder %s22, %s23
    %p37 = scmp.eq.s32.totalorder %s15, 1
    %p38 = por %p36, %p37
    %p40 = scmp.ne.s32.totalorder %s23, %s39
    %p41 = scmp.eq.s32.totalorder %s15, 0
    %p42 = por %p40, %p41
    %s43 = ssub.s32 %s9, %s16
    %p44 = scmp.eq.s32.totalorder %s43, 0
    %s46 = sadd.s32 %s45, 1
    %s47 = scalar_select %p44, %s45, %s46
    %p50 = pneg %p44
    %p51 = scmp.eq.s32.totalorder %s9, 1
    %p52 = por %p50, %p51
    %p53 = scmp.ne.s32.totalorder %s45, %s48
    %p54 = scmp.eq.s32.totalorder %s9, 0
    %p55 = por %p53, %p54
    %p56 = scmp.ne.s32.totalorder %s45, %s48
    %p57 = scmp.eq.s32.totalorder %s14, 1
    %p58 = por %p56, %p57
    %p59 = scmp.ne.s32.totalorder %s48, %s49
    %p60 = scmp.eq.s32.totalorder %s14, 0
    %p61 = por %p59, %p60
    %p62 = scmp.ne.s32.totalorder %s48, %s49
    %p63 = scmp.eq.s32.totalorder %s15, 1
    %p64 = por %p62, %p63
    %p66 = scmp.ne.s32.totalorder %s49, %s65
    %p67 = scmp.eq.s32.totalorder %s15, 0
    %p68 = por %p66, %p67
    %s69 = ssub.s32 %s9, %s16
    %p70 = scmp.eq.s32.totalorder %s69, 0
    %s72 = sadd.s32 %s71, 1
    %s73 = scalar_select %p70, %s71, %s72
    %p76 = pneg %p70
    %p77 = scmp.eq.s32.totalorder %s9, 1
    %p78 = por %p76, %p77
    %p79 = scmp.ne.s32.totalorder %s71, %s74
    %p80 = scmp.eq.s32.totalorder %s9, 0
    %p81 = por %p79, %p80
    %p82 = scmp.ne.s32.totalorder %s71, %s74
    %p83 = scmp.eq.s32.totalorder %s14, 1
    %p84 = por %p82, %p83
    %p85 = scmp.ne.s32.totalorder %s74, %s75
    %p86 = scmp.eq.s32.totalorder %s14, 0
    %p87 = por %p85, %p86
    %p88 = scmp.ne.s32.totalorder %s74, %s75
    %p89 = scmp.eq.s32.totalorder %s15, 1
    %p90 = por %p88, %p89
    %p92 = scmp.ne.s32.totalorder %s75, %s91
    %p93 = scmp.eq.s32.totalorder %s15, 0
    %p94 = por %p92, %p93
    %s95 = ssub.s32 %s9, %s16
    %p96 = scmp.eq.s32.totalorder %s95, 0
    %s98 = sadd.s32 %s97, 1
    %s99 = scalar_select %p96, %s97, %s98
    %p102 = pneg %p96
    %p103 = scmp.eq.s32.totalorder %s9, 1
    %p104 = por %p102, %p103
    %p105 = scmp.ne.s32.totalorder %s97, %s100
    %p106 = scmp.eq.s32.totalorder %s9, 0
    %p107 = por %p105, %p106
    %p108 = scmp.ne.s32.totalorder %s97, %s100
    %p109 = scmp.eq.s32.totalorder %s14, 1
    %p110 = por %p108, %p109
    %p111 = scmp.ne.s32.totalorder %s100, %s101
    %p112 = scmp.eq.s32.totalorder %s14, 0
    %p113 = por %p111, %p112
    %p114 = scmp.ne.s32.totalorder %s100, %s101
    %p115 = scmp.eq.s32.totalorder %s15, 1
    %p116 = por %p114, %p115
    %p118 = scmp.ne.s32.totalorder %s101, %s117
    %p119 = scmp.eq.s32.totalorder %s15, 0
    %p120 = por %p118, %p119
    %p121 = scmp.le.s32.totalorder 1, %s9
    %p122 = scmp.lt.s32.totalorder %s9, 3
    %p123 = pnand %p121, %p122
    %p124 = pneg %p123
    // Predicated region
    $region9: #{decoder_forward.3} parent=5 // pred_check
      _
    $region10: #{decoder_forward.3} parent=5 // pred_check_branch
      %126 = sbr.rel (%p123) target = $region12
    $region11: #{decoder_forward.3} parent=5 // pred_region
      %s127 = ssub.s32 %s9, 1
    $region12: #{decoder_forward.3} parent=5 // pred_fallthru
      _
    %p128 = scmp.lt.s32.totalorder %s9, 2
    // Predicated region
    $region13: #{decoder_forward.3} parent=5 // pred_check
      %p129 = pneg %p128
    $region14: #{decoder_forward.3} parent=5 // pred_check_branch
      %131 = sbr.rel (%p129) target = $region16
    $region15: #{decoder_forward.3} parent=5 // pred_region
      // Predicated region
      $region17: #{decoder_forward.3} parent=15 // pred_check
        %p132 = pneg %p29
      $region18: #{decoder_forward.3} parent=15 // pred_check_branch
        %134 = sbr.rel (%p132) target = $region20
      $region19: #{decoder_forward.3} parent=15 // pred_region
        %s135 = smul.u32 4, %s9
        %p136 = scmp.lt.s32.totalorder %s135, 7
        %s137 = scalar_select %p136, %s135, 7
        %s138 = smul.addr %s137, 8
        %s139 = scalar_lea.vmem %s0, %s138
        %s140 = smul.u32 4, %s9
      $region20: #{decoder_forward.3} parent=15 // pred_fallthru
        _
      // Predicated region
      $region21: #{decoder_forward.3} parent=15 // pred_check
        %p141 = pneg %p55
      $region22: #{decoder_forward.3} parent=15 // pred_check_branch
        %143 = sbr.rel (%p141) target = $region24
      $region23: #{decoder_forward.3} parent=15 // pred_region
        %s144 = smul.u32 4, %s9
        %p145 = scmp.lt.s32.totalorder %s144, 7
        %s146 = scalar_select %p145, %s144, 7
        %s147 = smul.addr %s146, 8
        %s148 = scalar_lea.vmem %s1, %s147
        %s149 = smul.u32 4, %s9
      $region24: #{decoder_forward.3} parent=15 // pred_fallthru
        _
      // Predicated region
      $region25: #{decoder_forward.3} parent=15 // pred_check
        %p150 = pneg %p81
      $region26: #{decoder_forward.3} parent=15 // pred_check_branch
        %152 = sbr.rel (%p150) target = $region28
      $region27: #{decoder_forward.3} parent=15 // pred_region
        %s153 = smul.u32 4, %s9
        %p154 = scmp.lt.s32.totalorder %s153, 7
        %s155 = scalar_select %p154, %s153, 7
        %s156 = smul.addr %s155, 8
        %s157 = scalar_lea.vmem %s2, %s156
        %s158 = smul.u32 4, %s9
      $region28: #{decoder_forward.3} parent=15 // pred_fallthru
        _
    $region16: #{decoder_forward.3} parent=5 // pred_fallthru
      _
    %p159 = scmp.le.s32.totalorder 1, %s9
    %p160 = scmp.lt.s32.totalorder %s9, 3
    %p161 = pnand %p159, %p160
    %p162 = pneg %p161
    // Predicated region
    $region29: #{decoder_forward.3} parent=5 // pred_check
      _
    $region30: #{decoder_forward.3} parent=5 // pred_check_branch
      %164 = sbr.rel (%p161) target = $region32
    $region31: #{decoder_forward.3} parent=5 // pred_region
      %s165 = ssub.s32 %s9, 1
      %s166 = smul.u32 4, %s14
      %p167 = scmp.lt.s32.totalorder %s166, 7
      %s168 = scalar_select %p167, %s166, 7
      %s169 = smul.addr %s168, 8
      %s170 = scalar_lea.vmem %s0, %s169
      %p171 = pneg %p35
      %p172 = pneg %p32
      %s173 = smul.u32 4, %s14
      %p174 = scmp.lt.s32.totalorder %s173, 7
      %s175 = scalar_select %p174, %s173, 7
      %s176 = smul.addr %s175, 8
      %s177 = scalar_lea.vmem %s1, %s176
      %p178 = pneg %p61
      %p179 = pneg %p58
      %s180 = smul.u32 4, %s14
      %p181 = scmp.lt.s32.totalorder %s180, 7
      %s182 = scalar_select %p181, %s180, 7
      %s183 = smul.addr %s182, 8
      %s184 = scalar_lea.vmem %s2, %s183
      %p185 = pneg %p87
      %p186 = pneg %p84
      %p187 = pneg %p113
      %p188 = pneg %p110
      %s189 = smul.u32 4, %s14
      %p190 = scmp.lt.s32.totalorder %s189, 7
      %s191 = scalar_select %p190, %s189, 7
      %s192 = smul.addr %s191, 8
      %s193 = scalar_lea.vmem %s3, %s192
      %s194 = smul.u32 4, %s14
      %p195 = scmp.lt.s32.totalorder %s194, 7
      %s196 = scalar_select %p195, %s194, 7
      %s197 = smul.addr %s196, 8
      %s198 = scalar_lea.vmem %s0, %s197
      %s199 = smul.u32 4, %s14
      %s200 = smul.u32 4, %s14
      %p201 = scmp.lt.s32.totalorder %s200, 7
      %s202 = scalar_select %p201, %s200, 7
      %s203 = smul.addr %s202, 8
      %s204 = scalar_lea.vmem %s1, %s203
      %s205 = smul.u32 4, %s14
      %s206 = smul.u32 4, %s14
      %p207 = scmp.lt.s32.totalorder %s206, 7
      %s208 = scalar_select %p207, %s206, 7
      %s209 = smul.addr %s208, 8
      %s210 = scalar_lea.vmem %s2, %s209
      %s211 = smul.u32 4, %s14
      %s212 = smul.u32 4, %s14
      %p213 = scmp.lt.s32.totalorder %s212, 7
      %s214 = scalar_select %p213, %s212, 7
      %s215 = smul.addr %s214, 8
      %s216 = scalar_lea.vmem %s3, %s215
      %s217 = smul.u32 4, %s14
      %v218 = vld [vmem:[%s204] sm:$0xff]
      %v219 = vld [vmem:[%s204 + $0x8] sm:$0xff]
      %v220 = vld [vmem:[%s204 + $0x10] sm:$0xff]
      %v221 = vld [vmem:[%s204 + $0x18] sm:$0xff]
      %v222 = vld [vmem:[%s198] sm:$0xff]
      %v223 = vld [vmem:[%s198 + $0x8] sm:$0xff]
      %v224 = vld [vmem:[%s198 + $0x10] sm:$0xff]
      %v225 = vld [vmem:[%s198 + $0x18] sm:$0xff]
      %v226 = vlaneseq
      %v227 = vand.u32 %v226, 127
      %vm228 = vcmp.lt.s32.totalorder %v227, 0
      %v229 = vsub.s32 0, %v227
      %v230 = vsel %vm228, %v229, %v227
      %v231 = vshrl.u32 %v230, 2
      %v232 = vand.u32 %v230, 3
      %v233 = vsub.s32 0, %v232
      %v234 = vsel %vm228, %v233, %v232
      %vm235 = vcmp.ne.s32.totalorder %v234, 0
      %vm236 = vcmp.lt.s32.totalorder %v234, 0
      %vm237 = vmand %vm236, %vm235
      %v238 = vadd.s32 %v234, 4
      %v239 = vsel %vm237, %v238, %v234
      %vm240 = vcmp.ge.s32.totalorder %v239, 1
      %245 = vrot.lane.b32.xlu0 %v218, 1
      %v246 = vpop.permute.xlu0 %245
      %247 = vrot.lane.b32.xlu0 %v219, 1
      %v248 = vpop.permute.xlu0 %247
      %249 = vrot.lane.b32.xlu0 %v220, 1
      %v250 = vpop.permute.xlu0 %249
      %251 = vrot.lane.b32.xlu0 %v221, 1
      %v252 = vpop.permute.xlu0 %251
      %vm257 = vcmask 7168
      %v258 = vsel %vm257, 0.0, %v246
      %v259 = vsel %vm257, 0.0, %v248
      %v260 = vsel %vm257, 0.0, %v250
      %v261 = vsel %vm257, 0.0, %v252
      %v262 = vsel %vm240, 1, 0
      %vm263 = vcmp.eq.s32.totalorder %v262, 1
      %v264 = vsel %vm263, %v258, 0.0
      %v265 = vsel %vm263, %v259, 0.0
      %v266 = vsel %vm263, %v260, 0.0
      %v267 = vsel %vm263, %v261, 0.0
      %vm268 = vcmp.le.s32.totalorder %v239, 2
      %269 = vrot.lane.b32.xlu0 %v218, 127
      %v270 = vpop.permute.xlu0 %269
      %271 = vrot.lane.b32.xlu0 %v219, 127
      %v272 = vpop.permute.xlu0 %271
      %273 = vrot.lane.b32.xlu0 %v220, 127
      %v274 = vpop.permute.xlu0 %273
      %275 = vrot.lane.b32.xlu0 %v221, 127
      %v276 = vpop.permute.xlu0 %275
      %vm281 = vcmask 121856
      %v282 = vsel %vm281, %v270, 0.0
      %v283 = vsel %vm281, %v272, 0.0
      %v284 = vsel %vm281, %v274, 0.0
      %v285 = vsel %vm281, %v276, 0.0
      %v286 = vsel %vm268, 1, 0
      %vm287 = vcmp.eq.s32.totalorder %v286, 1
      %v288 = vsel %vm287, %v282, 0.0
      %v289 = vsel %vm287, %v283, 0.0
      %v290 = vsel %vm287, %v284, 0.0
      %v291 = vsel %vm287, %v285, 0.0
      %293 = vset.pattern.permute.xlu0 0
      %294 = vperm.xlu0 %293, %v222
      %v295 = vpop.permute.xlu0 %294
      %298 = vset.pattern.permute.xlu0 0
      %299 = vperm.xlu0 %298, %v223
      %v300 = vpop.permute.xlu0 %299
      %303 = vset.pattern.permute.xlu0 0
      %304 = vperm.xlu0 %303, %v224
      %v305 = vpop.permute.xlu0 %304
      %308 = vset.pattern.permute.xlu0 0
      %309 = vperm.xlu0 %308, %v225
      %v310 = vpop.permute.xlu0 %309
      %v312 = vmul.f32 %v295, %v264
      %v313 = vmul.f32 %v300, %v265
      %v314 = vmul.f32 %v305, %v266
      %v315 = vmul.f32 %v310, %v267
      %316 = vset.pattern.permute.xlu0 1
      %317 = vperm.xlu0 %316, %v222
      %v318 = vpop.permute.xlu0 %317
      %320 = vset.pattern.permute.xlu0 1
      %321 = vperm.xlu0 %320, %v223
      %v322 = vpop.permute.xlu0 %321
      %324 = vset.pattern.permute.xlu0 1
      %325 = vperm.xlu0 %324, %v224
      %v326 = vpop.permute.xlu0 %325
      %328 = vset.pattern.permute.xlu0 1
      %329 = vperm.xlu0 %328, %v225
      %v330 = vpop.permute.xlu0 %329
      %v332 = vmul.f32 %v318, %v218
      %v333 = vmul.f32 %v322, %v219
      %v334 = vmul.f32 %v326, %v220
      %v335 = vmul.f32 %v330, %v221
      %v336 = vadd.f32 %v312, %v332
      %v337 = vadd.f32 %v313, %v333
      %v338 = vadd.f32 %v314, %v334
      %v339 = vadd.f32 %v315, %v335
      %340 = vset.pattern.permute.xlu0 2
      %341 = vperm.xlu0 %340, %v222
      %v342 = vpop.permute.xlu0 %341
      %344 = vset.pattern.permute.xlu0 2
      %345 = vperm.xlu0 %344, %v223
      %v346 = vpop.permute.xlu0 %345
      %348 = vset.pattern.permute.xlu0 2
      %349 = vperm.xlu0 %348, %v224
      %v350 = vpop.permute.xlu0 %349
      %352 = vset.pattern.permute.xlu0 2
      %353 = vperm.xlu0 %352, %v225
      %v354 = vpop.permute.xlu0 %353
      %v356 = vmul.f32 %v342, %v288
      %v357 = vmul.f32 %v346, %v289
      %v358 = vmul.f32 %v350, %v290
      %v359 = vmul.f32 %v354, %v291
      %v360 = vadd.f32 %v336, %v356
      %v361 = vadd.f32 %v337, %v357
      %v362 = vadd.f32 %v338, %v358
      %v363 = vadd.f32 %v339, %v359
      %364 = vset.pattern.permute.xlu0 3
      %365 = vperm.xlu0 %364, %v222
      %v366 = vpop.permute.xlu0 %365
      %368 = vset.pattern.permute.xlu0 3
      %369 = vperm.xlu0 %368, %v223
      %v370 = vpop.permute.xlu0 %369
      %372 = vset.pattern.permute.xlu0 3
      %373 = vperm.xlu0 %372, %v224
      %v374 = vpop.permute.xlu0 %373
      %376 = vset.pattern.permute.xlu0 3
      %377 = vperm.xlu0 %376, %v225
      %v378 = vpop.permute.xlu0 %377
      %v380 = vmul.f32 %v366, %v264
      %v381 = vmul.f32 %v370, %v265
      %v382 = vmul.f32 %v374, %v266
      %v383 = vmul.f32 %v378, %v267
      %384 = vset.pattern.permute.xlu0 4
      %385 = vperm.xlu0 %384, %v222
      %v386 = vpop.permute.xlu0 %385
      %388 = vset.pattern.permute.xlu0 4
      %389 = vperm.xlu0 %388, %v223
      %v390 = vpop.permute.xlu0 %389
      %392 = vset.pattern.permute.xlu0 4
      %393 = vperm.xlu0 %392, %v224
      %v394 = vpop.permute.xlu0 %393
      %396 = vset.pattern.permute.xlu0 4
      %397 = vperm.xlu0 %396, %v225
      %v398 = vpop.permute.xlu0 %397
      %v400 = vmul.f32 %v386, %v218
      %v401 = vmul.f32 %v390, %v219
      %v402 = vmul.f32 %v394, %v220
      %v403 = vmul.f32 %v398, %v221
      %v404 = vadd.f32 %v380, %v400
      %v405 = vadd.f32 %v381, %v401
      %v406 = vadd.f32 %v382, %v402
      %v407 = vadd.f32 %v383, %v403
      %408 = vset.pattern.permute.xlu0 5
      %409 = vperm.xlu0 %408, %v222
      %v410 = vpop.permute.xlu0 %409
      %412 = vset.pattern.permute.xlu0 5
      %413 = vperm.xlu0 %412, %v223
      %v414 = vpop.permute.xlu0 %413
      %416 = vset.pattern.permute.xlu0 5
      %417 = vperm.xlu0 %416, %v224
      %v418 = vpop.permute.xlu0 %417
      %420 = vset.pattern.permute.xlu0 5
      %421 = vperm.xlu0 %420, %v225
      %v422 = vpop.permute.xlu0 %421
      %v424 = vmul.f32 %v410, %v288
      %v425 = vmul.f32 %v414, %v289
      %v426 = vmul.f32 %v418, %v290
      %v427 = vmul.f32 %v422, %v291
      %v428 = vadd.f32 %v404, %v424
      %v429 = vadd.f32 %v405, %v425
      %v430 = vadd.f32 %v406, %v426
      %v431 = vadd.f32 %v407, %v427
      %432 = vset.pattern.permute.xlu0 6
      %433 = vperm.xlu0 %432, %v222
      %v434 = vpop.permute.xlu0 %433
      %436 = vset.pattern.permute.xlu0 6
      %437 = vperm.xlu0 %436, %v223
      %v438 = vpop.permute.xlu0 %437
      %440 = vset.pattern.permute.xlu0 6
      %441 = vperm.xlu0 %440, %v224
      %v442 = vpop.permute.xlu0 %441
      %444 = vset.pattern.permute.xlu0 6
      %445 = vperm.xlu0 %444, %v225
      %v446 = vpop.permute.xlu0 %445
      %v448 = vmul.f32 %v434, %v264
      %v449 = vmul.f32 %v438, %v265
      %v450 = vmul.f32 %v442, %v266
      %v451 = vmul.f32 %v446, %v267
      %452 = vset.pattern.permute.xlu0 7
      %453 = vperm.xlu0 %452, %v222
      %v454 = vpop.permute.xlu0 %453
      %456 = vset.pattern.permute.xlu0 7
      %457 = vperm.xlu0 %456, %v223
      %v458 = vpop.permute.xlu0 %457
      %460 = vset.pattern.permute.xlu0 7
      %461 = vperm.xlu0 %460, %v224
      %v462 = vpop.permute.xlu0 %461
      %464 = vset.pattern.permute.xlu0 7
      %465 = vperm.xlu0 %464, %v225
      %v466 = vpop.permute.xlu0 %465
      %v468 = vmul.f32 %v454, %v218
      %v469 = vmul.f32 %v458, %v219
      %v470 = vmul.f32 %v462, %v220
      %v471 = vmul.f32 %v466, %v221
      %v472 = vadd.f32 %v448, %v468
      %v473 = vadd.f32 %v449, %v469
      %v474 = vadd.f32 %v450, %v470
      %v475 = vadd.f32 %v451, %v471
      %476 = vset.pattern.permute.xlu0 8
      %477 = vperm.xlu0 %476, %v222
      %v478 = vpop.permute.xlu0 %477
      %480 = vset.pattern.permute.xlu0 8
      %481 = vperm.xlu0 %480, %v223
      %v482 = vpop.permute.xlu0 %481
      %484 = vset.pattern.permute.xlu0 8
      %485 = vperm.xlu0 %484, %v224
      %v486 = vpop.permute.xlu0 %485
      %488 = vset.pattern.permute.xlu0 8
      %489 = vperm.xlu0 %488, %v225
      %v490 = vpop.permute.xlu0 %489
      %v492 = vmul.f32 %v478, %v288
      %v493 = vmul.f32 %v482, %v289
      %v494 = vmul.f32 %v486, %v290
      %v495 = vmul.f32 %v490, %v291
      %v496 = vadd.f32 %v472, %v492
      %v497 = vadd.f32 %v473, %v493
      %v498 = vadd.f32 %v474, %v494
      %v499 = vadd.f32 %v475, %v495
      %504 = vrot.lane.b32.xlu0 %v360, 4
      %v505 = vpop.permute.xlu0 %504
      %506 = vrot.lane.b32.xlu0 %v361, 4
      %v507 = vpop.permute.xlu0 %506
      %508 = vrot.lane.b32.xlu0 %v362, 4
      %v509 = vpop.permute.xlu0 %508
      %510 = vrot.lane.b32.xlu0 %v363, 4
      %v511 = vpop.permute.xlu0 %510
      %vm516 = vcmask 31744
      %v517 = vsel %vm516, 0.0, %v505
      %v518 = vsel %vm516, 0.0, %v507
      %v519 = vsel %vm516, 0.0, %v509
      %v520 = vsel %vm516, 0.0, %v511
      %525 = vrot.lane.b32.xlu0 %v496, 124
      %v526 = vpop.permute.xlu0 %525
      %527 = vrot.lane.b32.xlu0 %v497, 124
      %v528 = vpop.permute.xlu0 %527
      %529 = vrot.lane.b32.xlu0 %v498, 124
      %v530 = vpop.permute.xlu0 %529
      %531 = vrot.lane.b32.xlu0 %v499, 124
      %v532 = vpop.permute.xlu0 %531
      %vm537 = vcmask 97280
      %v538 = vsel %vm537, %v526, 0.0
      %v539 = vsel %vm537, %v528, 0.0
      %v540 = vsel %vm537, %v530, 0.0
      %v541 = vsel %vm537, %v532, 0.0
      %v542 = vld [vmem:[%s210] sm:$0xff]
      %v543 = vld [vmem:[%s210 + $0x8] sm:$0xff]
      %v544 = vld [vmem:[%s210 + $0x10] sm:$0xff]
      %v545 = vld [vmem:[%s210 + $0x18] sm:$0xff]
      %546 = vset.pattern.permute.xlu0 9
      %547 = vperm.xlu0 %546, %v222
      %v548 = vpop.permute.xlu0 %547
      %550 = vset.pattern.permute.xlu0 9
      %551 = vperm.xlu0 %550, %v223
      %v552 = vpop.permute.xlu0 %551
      %554 = vset.pattern.permute.xlu0 9
      %555 = vperm.xlu0 %554, %v224
      %v556 = vpop.permute.xlu0 %555
      %558 = vset.pattern.permute.xlu0 9
      %559 = vperm.xlu0 %558, %v225
      %v560 = vpop.permute.xlu0 %559
      %v562 = vadd.f32 %v542, %v548
      %v563 = vadd.f32 %v543, %v552
      %v564 = vadd.f32 %v544, %v556
      %v565 = vadd.f32 %v545, %v560
      %v566 = vadd.f32 %v562, %v428
      %v567 = vadd.f32 %v563, %v429
      %v568 = vadd.f32 %v564, %v430
      %v569 = vadd.f32 %v565, %v431
      %v570 = vadd.f32 %v566, %v517
      %v571 = vadd.f32 %v567, %v518
      %v572 = vadd.f32 %v568, %v519
      %v573 = vadd.f32 %v569, %v520
      %v574 = vadd.f32 %v570, %v538
      %v575 = vadd.f32 %v571, %v539
      %v576 = vadd.f32 %v572, %v540
      %v577 = vadd.f32 %v573, %v541
      %vm578 = vcmask 130048
      %579 = vst.msk [vmem:[%s216] sm:$0xff] %vm578, %v574
      %580 = vst.msk [vmem:[%s216 + $0x8] sm:$0xff] %vm578, %v575
      %581 = vst.msk [vmem:[%s216 + $0x10] sm:$0xff] %vm578, %v576
      %582 = vst.msk [vmem:[%s216 + $0x18] sm:$0xff] %vm578, %v577
      %s583 = smul.u32 4, %s14
      %p584 = scmp.lt.s32.totalorder %s583, 7
      %s585 = scalar_select %p584, %s583, 7
      %s586 = smul.addr %s585, 8
      %s587 = scalar_lea.vmem %s3, %s586
      // Predicated region
      $region33: #{decoder_forward.3} parent=31 // pred_check
        %p588 = pneg %p110
      $region34: #{decoder_forward.3} parent=31 // pred_check_branch
        %590 = sbr.rel (%p588) target = $region36
      $region35: #{decoder_forward.3} parent=31 // pred_region
        %s591 = smul.u32 4, %s14
      $region36: #{decoder_forward.3} parent=31 // pred_fallthru
        _
    $region32: #{decoder_forward.3} parent=5 // pred_fallthru
      _
    %p592 = scmp.le.s32.totalorder 2, %s9
    // Predicated region
    $region37: #{decoder_forward.3} parent=5 // pred_check
      %p593 = pneg %p592
    $region38: #{decoder_forward.3} parent=5 // pred_check_branch
      %595 = sbr.rel (%p593) target = $region40
    $region39: #{decoder_forward.3} parent=5 // pred_region
      %s596 = ssub.s32 %s9, 2
      // Predicated region
      $region41: #{decoder_forward.3} parent=39 // pred_check
        %p597 = pneg %p116
      $region42: #{decoder_forward.3} parent=39 // pred_check_branch
        %599 = sbr.rel (%p597) target = $region44
      $region43: #{decoder_forward.3} parent=39 // pred_region
        %s600 = smul.u32 4, %s15
        %p601 = scmp.lt.s32.totalorder %s600, 7
        %s602 = scalar_select %p601, %s600, 7
        %s603 = smul.addr %s602, 8
        %s604 = scalar_lea.vmem %s3, %s603
      $region44: #{decoder_forward.3} parent=39 // pred_fallthru
        _
    $region40: #{decoder_forward.3} parent=5 // pred_fallthru
      _
  $region6: #{decoder_forward.3} parent=0 // loop_footer
    %s13 = sadd.s32 1, %s9
  $region7: #{decoder_forward.3} parent=0 // loop_footer_branch
    %8 = sbr.rel target = $region3
  $region8: #{decoder_forward.3} parent=0 // loop_exit
    _

// kernel: decoder_forward.4
$region0: #{decoder_forward.4}
  #allocation0 [shape = 'u32[]', space=smem, size = 0x4, offset = 0x4, fixed_abs, tag = 'smem constant byte address 0x4 - core index']
  #allocation1 [shape = 'u32[144,128]{1,0:T(1,128)}', space=vmem, size = 0x12000, scoped, tag = 'internal scratch']
  %s0 = inlined_call_operand.vmem [shape: f32[32,10], index: 0, kind: input, shape index: {}]
  %s1 = inlined_call_operand.vmem [shape: f32[32,64], index: 1, kind: input, shape index: {}]
  %s2 = inlined_call_operand.vmem [shape: f32[32,64], index: 2, kind: input, shape index: {}, may-alias: {2,3}]
  %s3 = inlined_call_operand.vmem [shape: f32[32,64], index: 3, kind: output, shape index: {}, may-alias: {2,3}]
  %s4 = sld [smem:[#allocation0]]
  $region45: #{decoder_forward.4} parent=0
    _
  %s6 = ssub.s32 1, %s4
  %s7 = scalar_select 0, %s6, %s4
  loop: start=0, step=1, limit=4
  $region2: #{decoder_forward.4} parent=0 // loop_pre_header
    _
  $region3: #{decoder_forward.4} parent=0 // loop_header
    %s9 = sphi 0, %s13
    %p10 = scmp.ge.s32.totalorder %s9, 4
    %s19 = sphi 0, %s21
    %s22 = sphi 0, %s19
    %s23 = sphi 0, %s22
    %s39 = sphi 0, %s23
    %s45 = sphi 0, %s47
    %s48 = sphi 0, %s45
    %s49 = sphi 0, %s48
    %s65 = sphi 0, %s49
    %s71 = sphi 0, %s73
    %s74 = sphi 0, %s71
    %s75 = sphi 0, %s74
    %s91 = sphi 0, %s75
    %s97 = sphi 0, %s99
    %s100 = sphi 0, %s97
    %s101 = sphi 0, %s100
    %s117 = sphi 0, %s101
  $region4: #{decoder_forward.4} parent=0 // loop_header_branch
    %12 = sbr.rel (%p10) target = $region8
  $region5: #{decoder_forward.4} parent=0 // loop_body
    %s14 = ssub.s32 %s9, 1
    %s15 = ssub.s32 %s9, 2
    %s16 = sadd.s32 %s9, 1
    %s17 = ssub.s32 %s9, %s16
    %p18 = scmp.eq.s32.totalorder %s17, 0
    %s20 = sadd.s32 %s19, 1
    %s21 = scalar_select %p18, %s19, %s20
    %p24 = pneg %p18
    %p25 = scmp.eq.s32.totalorder %s9, 1
    %p26 = por %p24, %p25
    %p27 = scmp.ne.s32.totalorder %s19, %s22
    %p28 = scmp.eq.s32.totalorder %s9, 0
    %p29 = por %p27, %p28
    %p30 = scmp.ne.s32.totalorder %s19, %s22
    %p31 = scmp.eq.s32.totalorder %s14, 1
    %p32 = por %p30, %p31
    %p33 = scmp.ne.s32.totalorder %s22, %s23
    %p34 = scmp.eq.s32.totalorder %s14, 0
    %p35 = por %p33, %p34
    %p36 = scmp.ne.s32.totalorder %s22, %s23
    %p37 = scmp.eq.s32.totalorder %s15, 1
    %p38 = por %p36, %p37
    %p40 = scmp.ne.s32.totalorder %s23, %s39
    %p41 = scmp.eq.s32.totalorder %s15, 0
    %p42 = por %p40, %p41
    %s43 = ssub.s32 %s9, %s16
    %p44 = scmp.eq.s32.totalorder %s43, 0
    %s46 = sadd.s32 %s45, 1
    %s47 = scalar_select %p44, %s45, %s46
    %p50 = pneg %p44
    %p51 = scmp.eq.s32.totalorder %s9, 1
    %p52 = por %p50, %p51
    %p53 = scmp.ne.s32.totalorder %s45, %s48
    %p54 = scmp.eq.s32.totalorder %s9, 0
    %p55 = por %p53, %p54
    %p56 = scmp.ne.s32.totalorder %s45, %s48
    %p57 = scmp.eq.s32.totalorder %s14, 1
    %p58 = por %p56, %p57
    %p59 = scmp.ne.s32.totalorder %s48, %s49
    %p60 = scmp.eq.s32.totalorder %s14, 0
    %p61 = por %p59, %p60
    %p62 = scmp.ne.s32.totalorder %s48, %s49
    %p63 = scmp.eq.s32.totalorder %s15, 1
    %p64 = por %p62, %p63
    %p66 = scmp.ne.s32.totalorder %s49, %s65
    %p67 = scmp.eq.s32.totalorder %s15, 0
    %p68 = por %p66, %p67
    %s69 = ssub.s32 %s9, %s16
    %p70 = scmp.eq.s32.totalorder %s69, 0
    %s72 = sadd.s32 %s71, 1
    %s73 = scalar_select %p70, %s71, %s72
    %p76 = pneg %p70
    %p77 = scmp.eq.s32.totalorder %s9, 1
    %p78 = por %p76, %p77
    %p79 = scmp.ne.s32.totalorder %s71, %s74
    %p80 = scmp.eq.s32.totalorder %s9, 0
    %p81 = por %p79, %p80
    %p82 = scmp.ne.s32.totalorder %s71, %s74
    %p83 = scmp.eq.s32.totalorder %s14, 1
    %p84 = por %p82, %p83
    %p85 = scmp.ne.s32.totalorder %s74, %s75
    %p86 = scmp.eq.s32.totalorder %s14, 0
    %p87 = por %p85, %p86
    %p88 = scmp.ne.s32.totalorder %s74, %s75
    %p89 = scmp.eq.s32.totalorder %s15, 1
    %p90 = por %p88, %p89
    %p92 = scmp.ne.s32.totalorder %s75, %s91
    %p93 = scmp.eq.s32.totalorder %s15, 0
    %p94 = por %p92, %p93
    %s95 = ssub.s32 %s9, %s16
    %p96 = scmp.eq.s32.totalorder %s95, 0
    %s98 = sadd.s32 %s97, 1
    %s99 = scalar_select %p96, %s97, %s98
    %p102 = pneg %p96
    %p103 = scmp.eq.s32.totalorder %s9, 1
    %p104 = por %p102, %p103
    %p105 = scmp.ne.s32.totalorder %s97, %s100
    %p106 = scmp.eq.s32.totalorder %s9, 0
    %p107 = por %p105, %p106
    %p108 = scmp.ne.s32.totalorder %s97, %s100
    %p109 = scmp.eq.s32.totalorder %s14, 1
    %p110 = por %p108, %p109
    %p111 = scmp.ne.s32.totalorder %s100, %s101
    %p112 = scmp.eq.s32.totalorder %s14, 0
    %p113 = por %p111, %p112
    %p114 = scmp.ne.s32.totalorder %s100, %s101
    %p115 = scmp.eq.s32.totalorder %s15, 1
    %p116 = por %p114, %p115
    %p118 = scmp.ne.s32.totalorder %s101, %s117
    %p119 = scmp.eq.s32.totalorder %s15, 0
    %p120 = por %p118, %p119
    %p121 = scmp.le.s32.totalorder 1, %s9
    %p122 = scmp.lt.s32.totalorder %s9, 3
    %p123 = pnand %p121, %p122
    %p124 = pneg %p123
    // Predicated region
    $region9: #{decoder_forward.4} parent=5 // pred_check
      _
    $region10: #{decoder_forward.4} parent=5 // pred_check_branch
      %126 = sbr.rel (%p123) target = $region12
    $region11: #{decoder_forward.4} parent=5 // pred_region
      %s127 = ssub.s32 %s9, 1
    $region12: #{decoder_forward.4} parent=5 // pred_fallthru
      _
    %p128 = scmp.lt.s32.totalorder %s9, 2
    // Predicated region
    $region13: #{decoder_forward.4} parent=5 // pred_check
      %p129 = pneg %p128
    $region14: #{decoder_forward.4} parent=5 // pred_check_branch
      %131 = sbr.rel (%p129) target = $region16
    $region15: #{decoder_forward.4} parent=5 // pred_region
      // Predicated region
      $region17: #{decoder_forward.4} parent=15 // pred_check
        %p132 = pneg %p29
      $region18: #{decoder_forward.4} parent=15 // pred_check_branch
        %134 = sbr.rel (%p132) target = $region20
      $region19: #{decoder_forward.4} parent=15 // pred_region
        %s135 = smul.u32 2, %s9
        %p136 = scmp.lt.s32.totalorder %s135, 3
        %s137 = scalar_select %p136, %s135, 3
        %s138 = smul.addr %s137, 8
        %s139 = scalar_lea.vmem %s0, %s138
        %s140 = smul.u32 2, %s9
      $region20: #{decoder_forward.4} parent=15 // pred_fallthru
        _
      // Predicated region
      $region21: #{decoder_forward.4} parent=15 // pred_check
        %p141 = pneg %p55
      $region22: #{decoder_forward.4} parent=15 // pred_check_branch
        %143 = sbr.rel (%p141) target = $region24
      $region23: #{decoder_forward.4} parent=15 // pred_region
        %s144 = smul.u32 2, %s9
        %p145 = scmp.lt.s32.totalorder %s144, 3
        %s146 = scalar_select %p145, %s144, 3
        %s147 = smul.addr %s146, 8
        %s148 = scalar_lea.vmem %s1, %s147
        %s149 = smul.u32 2, %s9
      $region24: #{decoder_forward.4} parent=15 // pred_fallthru
        _
      // Predicated region
      $region25: #{decoder_forward.4} parent=15 // pred_check
        %p150 = pneg %p81
      $region26: #{decoder_forward.4} parent=15 // pred_check_branch
        %152 = sbr.rel (%p150) target = $region28
      $region27: #{decoder_forward.4} parent=15 // pred_region
        %s153 = smul.u32 2, %s9
        %p154 = scmp.lt.s32.totalorder %s153, 3
        %s155 = scalar_select %p154, %s153, 3
        %s156 = smul.addr %s155, 8
        %s157 = scalar_lea.vmem %s2, %s156
        %s158 = smul.u32 2, %s9
      $region28: #{decoder_forward.4} parent=15 // pred_fallthru
        _
    $region16: #{decoder_forward.4} parent=5 // pred_fallthru
      _
    %p159 = scmp.le.s32.totalorder 1, %s9
    %p160 = scmp.lt.s32.totalorder %s9, 3
    %p161 = pnand %p159, %p160
    %p162 = pneg %p161
    // Predicated region
    $region29: #{decoder_forward.4} parent=5 // pred_check
      _
    $region30: #{decoder_forward.4} parent=5 // pred_check_branch
      %164 = sbr.rel (%p161) target = $region32
    $region31: #{decoder_forward.4} parent=5 // pred_region
      %s165 = ssub.s32 %s9, 1
      %s166 = smul.u32 2, %s14
      %p167 = scmp.lt.s32.totalorder %s166, 3
      %s168 = scalar_select %p167, %s166, 3
      %s169 = smul.addr %s168, 8
      %s170 = scalar_lea.vmem %s0, %s169
      %p171 = pneg %p35
      %p172 = pneg %p32
      %s173 = smul.u32 2, %s14
      %p174 = scmp.lt.s32.totalorder %s173, 3
      %s175 = scalar_select %p174, %s173, 3
      %s176 = smul.addr %s175, 8
      %s177 = scalar_lea.vmem %s1, %s176
      %p178 = pneg %p61
      %p179 = pneg %p58
      %s180 = smul.u32 2, %s14
      %p181 = scmp.lt.s32.totalorder %s180, 3
      %s182 = scalar_select %p181, %s180, 3
      %s183 = smul.addr %s182, 8
      %s184 = scalar_lea.vmem %s2, %s183
      %p185 = pneg %p87
      %p186 = pneg %p84
      %p187 = pneg %p113
      %p188 = pneg %p110
      %s189 = smul.u32 2, %s14
      %p190 = scmp.lt.s32.totalorder %s189, 3
      %s191 = scalar_select %p190, %s189, 3
      %s192 = smul.addr %s191, 8
      %s193 = scalar_lea.vmem %s3, %s192
      %s194 = smul.u32 2, %s14
      %p195 = scmp.lt.s32.totalorder %s194, 3
      %s196 = scalar_select %p195, %s194, 3
      %s197 = smul.addr %s196, 8
      %s198 = scalar_lea.vmem %s0, %s197
      %s199 = smul.u32 2, %s14
      %s200 = smul.u32 2, %s14
      %p201 = scmp.lt.s32.totalorder %s200, 3
      %s202 = scalar_select %p201, %s200, 3
      %s203 = smul.addr %s202, 8
      %s204 = scalar_lea.vmem %s1, %s203
      %s205 = smul.u32 2, %s14
      %s206 = smul.u32 2, %s14
      %p207 = scmp.lt.s32.totalorder %s206, 3
      %s208 = scalar_select %p207, %s206, 3
      %s209 = smul.addr %s208, 8
      %s210 = scalar_lea.vmem %s2, %s209
      %s211 = smul.u32 2, %s14
      %s212 = smul.u32 2, %s14
      %p213 = scmp.lt.s32.totalorder %s212, 3
      %s214 = scalar_select %p213, %s212, 3
      %s215 = smul.addr %s214, 8
      %s216 = scalar_lea.vmem %s3, %s215
      %s217 = smul.u32 2, %s14
      %v218 = vld [vmem:[%s204] sm:$0xff]
      %v219 = vld [vmem:[%s204 + $0x8] sm:$0xff]
      %v220 = vld [vmem:[%s198] sm:$0xff]
      %v221 = vld [vmem:[%s198 + $0x8] sm:$0xff]
      %v222 = vlaneseq
      %v223 = vand.u32 %v222, 127
      %vm224 = vcmp.lt.s32.totalorder %v223, 0
      %v225 = vsub.s32 0, %v223
      %v226 = vsel %vm224, %v225, %v223
      %v227 = vshrl.u32 %v226, 3
      %v228 = vand.u32 %v226, 7
      %v229 = vsub.s32 0, %v228
      %v230 = vsel %vm224, %v229, %v228
      %vm231 = vcmp.ne.s32.totalorder %v230, 0
      %vm232 = vcmp.lt.s32.totalorder %v230, 0
      %vm233 = vmand %vm232, %vm231
      %v234 = vadd.s32 %v230, 8
      %v235 = vsel %vm233, %v234, %v230
      %vm236 = vcmp.ge.s32.totalorder %v235, 1
      %239 = vrot.lane.b32.xlu0 %v218, 1
      %v240 = vpop.permute.xlu0 %239
      %241 = vrot.lane.b32.xlu0 %v219, 1
      %v242 = vpop.permute.xlu0 %241
      %vm245 = vcmask 7168
      %v246 = vsel %vm245, 0.0, %v240
      %v247 = vsel %vm245, 0.0, %v242
      %v248 = vsel %vm236, 1, 0
      %vm249 = vcmp.eq.s32.totalorder %v248, 1
      %v250 = vsel %vm249, %v246, 0.0
      %v251 = vsel %vm249, %v247, 0.0
      %vm252 = vcmp.le.s32.totalorder %v235, 6
      %253 = vrot.lane.b32.xlu0 %v218, 127
      %v254 = vpop.permute.xlu0 %253
      %255 = vrot.lane.b32.xlu0 %v219, 127
      %v256 = vpop.permute.xlu0 %255
      %vm259 = vcmask 515072
      %v260 = vsel %vm259, %v254, 0.0
      %v261 = vsel %vm259, %v256, 0.0
      %v262 = vsel %vm252, 1, 0
      %vm263 = vcmp.eq.s32.totalorder %v262, 1
      %v264 = vsel %vm263, %v260, 0.0
      %v265 = vsel %vm263, %v261, 0.0
      %267 = vset.pattern.permute.xlu0 0
      %268 = vperm.xlu0 %267, %v220
      %v269 = vpop.permute.xlu0 %268
      %272 = vset.pattern.permute.xlu0 0
      %273 = vperm.xlu0 %272, %v221
      %v274 = vpop.permute.xlu0 %273
      %v276 = vmul.f32 %v269, %v250
      %v277 = vmul.f32 %v274, %v251
      %278 = vset.pattern.permute.xlu0 1
      %279 = vperm.xlu0 %278, %v220
      %v280 = vpop.permute.xlu0 %279
      %282 = vset.pattern.permute.xlu0 1
      %283 = vperm.xlu0 %282, %v221
      %v284 = vpop.permute.xlu0 %283
      %v286 = vmul.f32 %v280, %v218
      %v287 = vmul.f32 %v284, %v219
      %v288 = vadd.f32 %v276, %v286
      %v289 = vadd.f32 %v277, %v287
      %290 = vset.pattern.permute.xlu0 2
      %291 = vperm.xlu0 %290, %v220
      %v292 = vpop.permute.xlu0 %291
      %294 = vset.pattern.permute.xlu0 2
      %295 = vperm.xlu0 %294, %v221
      %v296 = vpop.permute.xlu0 %295
      %v298 = vmul.f32 %v292, %v264
      %v299 = vmul.f32 %v296, %v265
      %v300 = vadd.f32 %v288, %v298
      %v301 = vadd.f32 %v289, %v299
      %302 = vset.pattern.permute.xlu0 3
      %303 = vperm.xlu0 %302, %v220
      %v304 = vpop.permute.xlu0 %303
      %306 = vset.pattern.permute.xlu0 3
      %307 = vperm.xlu0 %306, %v221
      %v308 = vpop.permute.xlu0 %307
      %v310 = vmul.f32 %v304, %v250
      %v311 = vmul.f32 %v308, %v251
      %312 = vset.pattern.permute.xlu0 4
      %313 = vperm.xlu0 %312, %v220
      %v314 = vpop.permute.xlu0 %313
      %316 = vset.pattern.permute.xlu0 4
      %317 = vperm.xlu0 %316, %v221
      %v318 = vpop.permute.xlu0 %317
      %v320 = vmul.f32 %v314, %v218
      %v321 = vmul.f32 %v318, %v219
      %v322 = vadd.f32 %v310, %v320
      %v323 = vadd.f32 %v311, %v321
      %324 = vset.pattern.permute.xlu0 5
      %325 = vperm.xlu0 %324, %v220
      %v326 = vpop.permute.xlu0 %325
      %328 = vset.pattern.permute.xlu0 5
      %329 = vperm.xlu0 %328, %v221
      %v330 = vpop.permute.xlu0 %329
      %v332 = vmul.f32 %v326, %v264
      %v333 = vmul.f32 %v330, %v265
      %v334 = vadd.f32 %v322, %v332
      %v335 = vadd.f32 %v323, %v333
      %336 = vset.pattern.permute.xlu0 6
      %337 = vperm.xlu0 %336, %v220
      %v338 = vpop.permute.xlu0 %337
      %340 = vset.pattern.permute.xlu0 6
      %341 = vperm.xlu0 %340, %v221
      %v342 = vpop.permute.xlu0 %341
      %v344 = vmul.f32 %v338, %v250
      %v345 = vmul.f32 %v342, %v251
      %346 = vset.pattern.permute.xlu0 7
      %347 = vperm.xlu0 %346, %v220
      %v348 = vpop.permute.xlu0 %347
      %350 = vset.pattern.permute.xlu0 7
      %351 = vperm.xlu0 %350, %v221
      %v352 = vpop.permute.xlu0 %351
      %v354 = vmul.f32 %v348, %v218
      %v355 = vmul.f32 %v352, %v219
      %v356 = vadd.f32 %v344, %v354
      %v357 = vadd.f32 %v345, %v355
      %358 = vset.pattern.permute.xlu0 8
      %359 = vperm.xlu0 %358, %v220
      %v360 = vpop.permute.xlu0 %359
      %362 = vset.pattern.permute.xlu0 8
      %363 = vperm.xlu0 %362, %v221
      %v364 = vpop.permute.xlu0 %363
      %v366 = vmul.f32 %v360, %v264
      %v367 = vmul.f32 %v364, %v265
      %v368 = vadd.f32 %v356, %v366
      %v369 = vadd.f32 %v357, %v367
      %372 = vrot.lane.b32.xlu0 %v300, 8
      %v373 = vpop.permute.xlu0 %372
      %374 = vrot.lane.b32.xlu0 %v301, 8
      %v375 = vpop.permute.xlu0 %374
      %vm378 = vcmask 64512
      %v379 = vsel %vm378, 0.0, %v373
      %v380 = vsel %vm378, 0.0, %v375
      %383 = vrot.lane.b32.xlu0 %v368, 120
      %v384 = vpop.permute.xlu0 %383
      %385 = vrot.lane.b32.xlu0 %v369, 120
      %v386 = vpop.permute.xlu0 %385
      %vm389 = vcmask 457728
      %v390 = vsel %vm389, %v384, 0.0
      %v391 = vsel %vm389, %v386, 0.0
      %v392 = vld [vmem:[%s210] sm:$0xff]
      %v393 = vld [vmem:[%s210 + $0x8] sm:$0xff]
      %394 = vset.pattern.permute.xlu0 9
      %395 = vperm.xlu0 %394, %v220
      %v396 = vpop.permute.xlu0 %395
      %398 = vset.pattern.permute.xlu0 9
      %399 = vperm.xlu0 %398, %v221
      %v400 = vpop.permute.xlu0 %399
      %v402 = vadd.f32 %v392, %v396
      %v403 = vadd.f32 %v393, %v400
      %v404 = vadd.f32 %v402, %v334
      %v405 = vadd.f32 %v403, %v335
      %v406 = vadd.f32 %v404, %v379
      %v407 = vadd.f32 %v405, %v380
      %v408 = vadd.f32 %v406, %v390
      %v409 = vadd.f32 %v407, %v391
      %vm410 = vcmask 523264
      %411 = vst.msk [vmem:[%s216] sm:$0xff] %vm410, %v408
      %412 = vst.msk [vmem:[%s216 + $0x8] sm:$0xff] %vm410, %v409
      %s413 = smul.u32 2, %s14
      %p414 = scmp.lt.s32.totalorder %s413, 3
      %s415 = scalar_select %p414, %s413, 3
      %s416 = smul.addr %s415, 8
      %s417 = scalar_lea.vmem %s3, %s416
      // Predicated region
      $region33: #{decoder_forward.4} parent=31 // pred_check
        %p418 = pneg %p110
      $region34: #{decoder_forward.4} parent=31 // pred_check_branch
        %420 = sbr.rel (%p418) target = $region36
      $region35: #{decoder_forward.4} parent=31 // pred_region
        %s421 = smul.u32 2, %s14
      $region36: #{decoder_forward.4} parent=31 // pred_fallthru
        _
    $region32: #{decoder_forward.4} parent=5 // pred_fallthru
      _
    %p422 = scmp.le.s32.totalorder 2, %s9
    // Predicated region
    $region37: #{decoder_forward.4} parent=5 // pred_check
      %p423 = pneg %p422
    $region38: #{decoder_forward.4} parent=5 // pred_check_branch
      %425 = sbr.rel (%p423) target = $region40
    $region39: #{decoder_forward.4} parent=5 // pred_region
      %s426 = ssub.s32 %s9, 2
      // Predicated region
      $region41: #{decoder_forward.4} parent=39 // pred_check
        %p427 = pneg %p116
      $region42: #{decoder_forward.4} parent=39 // pred_check_branch
        %429 = sbr.rel (%p427) target = $region44
      $region43: #{decoder_forward.4} parent=39 // pred_region
        %s430 = smul.u32 2, %s15
        %p431 = scmp.lt.s32.totalorder %s430, 3
        %s432 = scalar_select %p431, %s430, 3
        %s433 = smul.addr %s432, 8
        %s434 = scalar_lea.vmem %s3, %s433
      $region44: #{decoder_forward.4} parent=39 // pred_fallthru
        _
    $region40: #{decoder_forward.4} parent=5 // pred_fallthru
      _
  $region6: #{decoder_forward.4} parent=0 // loop_footer
    %s13 = sadd.s32 1, %s9
  $region7: #{decoder_forward.4} parent=0 // loop_footer_branch
    %8 = sbr.rel target = $region3
  $region8: #{decoder_forward.4} parent=0 // loop_exit
    _

</llo_original>
